<compile_context>
chip_gen: v5e
topology: v5e:2x2
jax: 0.10.0
libtpu: 0.0.40
codegen_flags: <defaults>
</compile_context>

<pallas_src>
import jax
import jax.numpy as jnp
from jax.experimental import pallas as pl
from jax.experimental.pallas import tpu as pltpu

_LANE = 128      # vreg lane width
_SUBLANE = 8     # vreg sublane count


def _round_up(n, m):
    return ((n + m - 1) // m) * m


def _cdiv(a, b):
    return -(-a // b)


# ----------------------------------------------------------------------------
# Kernel bodies
# ----------------------------------------------------------------------------
def _input_layer(x_ref, w_in_ref, b_in_ref):
    """tanh(x @ W_in + b_in) for one batch tile (returns f32 value)."""
    x = x_ref[...].astype(jnp.float32)          # [TB, input_dim]
    w_in = w_in_ref[...].astype(jnp.float32)    # [input_dim, Hp]
    b_in = b_in_ref[...].astype(jnp.float32)    # [1, Hp]
    input_dim = x.shape[1]
    if input_dim <= 8:
        # Degenerate-K matmul would waste a full MXU pass; do it on the VPU.
        # Bias is folded into the first broadcast FMA (no separate bias tile).
        acc = x[:, 0:1] * w_in[0:1, :] + b_in
        for k in range(1, input_dim):
            acc = acc + x[:, k:k + 1] * w_in[k:k + 1, :]
    else:
        acc = jnp.dot(x, w_in, preferred_element_type=jnp.float32) + b_in
    return jnp.tanh(acc)


def _output_layer(h, w_out_ref, b_out_ref, o_ref):
    """o = h @ W_out + b_out (no activation), lane-dense store."""
    w_out = w_out_ref[...].astype(jnp.float32)  # [Hp, Op]
    b_out = b_out_ref[...].astype(jnp.float32)  # [1, Op]
    y = jnp.dot(h, w_out, preferred_element_type=jnp.float32) + b_out
    o_ref[...] = y.astype(o_ref.dtype)


def _mlp_streamed_kernel(x_ref, w_in_ref, b_in_ref, w_hid_ref, b_hid_ref,
                         w_out_ref, b_out_ref, o_ref, h_ref):
    """Grid = (batch_tiles, n_hidden).

    One hidden-weight slab (1, Hp, Hp) is streamed (auto double-buffered) per
    step along the 'arbitrary' layer axis; the activation is carried in the
    VMEM scratch h_ref.  Input layer runs at l==0, output layer at l==last.
    """
    l = pl.program_id(1)

    @pl.when(l == 0)
    def _():
        h_ref[...] = _input_layer(x_ref, w_in_ref, b_in_ref)

    # ---- hidden layer l : h <- tanh(h @ W_l + b_l) --------------------------
    w = w_hid_ref[0].astype(jnp.float32)        # [Hp, Hp]
    b = b_hid_ref[0].astype(jnp.float32)        # [1, Hp]
    h_ref[...] = jnp.tanh(
        jnp.dot(h_ref[...], w, preferred_element_type=jnp.float32) + b)

    @pl.when(l == pl.num_programs(1) - 1)
    def _():
        _output_layer(h_ref[...], w_out_ref, b_out_ref, o_ref)


def _mlp_no_hidden_kernel(x_ref, w_in_ref, b_in_ref, w_out_ref, b_out_ref,
                          o_ref):
    """hidden_layers == 1: input layer + tanh + output layer only."""
    h = _input_layer(x_ref, w_in_ref, b_in_ref)
    _output_layer(h, w_out_ref, b_out_ref, o_ref)


# ----------------------------------------------------------------------------
# Parameter preparation (lane-padding done ONCE, not per forward call)
# ----------------------------------------------------------------------------
def prepare_params(params):
    w_in_t, b_in, w_hid_t, b_hid, w_out_t, b_out = params
    input_dim, hidden = w_in_t.shape
    output_dim = w_out_t.shape[1]
    n_hidden = int(w_hid_t.shape[0])
    hp = _round_up(hidden, _LANE)           # lane-dense hidden width
    op = _round_up(output_dim, _LANE)       # lane-dense output width

    prepared = dict(
        input_dim=input_dim, hidden=hidden, output_dim=output_dim,
        n_hidden=n_hidden, hp=hp, op=op,
        w_in=jnp.pad(w_in_t, ((0, 0), (0, hp - hidden))),
        b_in=jnp.pad(b_in, ((0, 0), (0, hp - hidden))),
        w_out=jnp.pad(w_out_t, ((0, hp - hidden), (0, op - output_dim))),
        b_out=jnp.pad(b_out, ((0, 0), (0, op - output_dim))),
    )
    if n_hidden > 0:
        prepared["w_hid"] = jnp.pad(
            w_hid_t, ((0, 0), (0, hp - hidden), (0, hp - hidden)))
        prepared["b_hid"] = jnp.pad(b_hid, ((0, 0), (0, 0), (0, hp - hidden)))
    return prepared


# ----------------------------------------------------------------------------
# Batch tiling heuristic
# ----------------------------------------------------------------------------
def _choose_batch_tiling(B, per_row_bytes, target_tile_bytes):
    """Auto-size the batch tile from a VMEM budget.

    - tile rows come in MXU-friendly 256-row granules when B >= 256, otherwise
      just the 8-row sublane granule (avoids padding tiny batches to 256);
    - the number of grid steps is forced even when >1 so the 'parallel' batch
      axis splits cleanly across v7x's two TensorCores;
    - for a single-step grid the tile is only rounded to 8 rows, so B=300
      costs 304 rows, not 512.
    """
    granule = 256 if B >= 256 else _SUBLANE
    max_tile = max(granule,
                   (target_tile_bytes // max(per_row_bytes, 1))
                   // granule * granule)
    steps = max(1, _cdiv(B, max_tile))
    if steps > 1 and steps % 2:
        steps += 1
    batch_tile = _round_up(_cdiv(B, steps), _SUBLANE)
    return batch_tile, steps


# ----------------------------------------------------------------------------
# Forward wrapper
# ----------------------------------------------------------------------------
def feedforward_pallas(x, prepared, *, target_tile_bytes=4 << 20):
    """Fused MLP forward.  `prepared` must come from prepare_params()."""
    B, input_dim = x.shape
    assert input_dim == prepared["input_dim"]
    hp, op = prepared["hp"], prepared["op"]
    n_hidden = prepared["n_hidden"]
    out_dtype = x.dtype

    # per-row VMEM: double-buffered x / out tiles + activation scratch
    per_row_bytes = 2 * 4 * (input_dim + op) + 4 * hp
    batch_tile, steps = _choose_batch_tiling(B, per_row_bytes,
                                             target_tile_bytes)
    bp = batch_tile * steps
    x_p = jnp.pad(x, ((0, bp - B), (0, 0))) if bp != B else x

    # --- VMEM budget (streamed hidden slab + constant weights + I/O tiles) ---
    weight_const_bytes = 4 * (input_dim * hp + hp + hp * op + op)
    hid_slab_bytes = 4 * (hp * hp + hp) if n_hidden > 0 else 0
    tile_io_bytes = 4 * batch_tile * (input_dim + op)
    scratch_bytes = 4 * batch_tile * hp if n_hidden > 0 else 0
    vmem_needed = (2 * (weight_const_bytes + hid_slab_bytes + tile_io_bytes)
                   + scratch_bytes)
    vmem_limit = int(min(max(int(1.5 * vmem_needed), 2 << 20), 64 << 20))

    # --- advisory cost estimate ----------------------------------------------
    flops = 2 * bp * (input_dim * hp + n_hidden * hp * hp + hp * op)
    transcendentals = bp * hp * (1 + n_hidden)
    bytes_accessed = (4 * bp * (input_dim + op)
                      + steps * (weight_const_bytes
                                 + n_hidden * 4 * (hp * hp + hp)))
    cost = pl.CostEstimate(flops=int(flops),
                           transcendentals=int(transcendentals),
                           bytes_accessed=int(bytes_accessed))

    if n_hidden > 0:
        grid = (steps, n_hidden)
        in_specs = [
            pl.BlockSpec((batch_tile, input_dim), lambda i, l: (i, 0)),
            pl.BlockSpec((input_dim, hp), lambda i, l: (0, 0)),
            pl.BlockSpec((1, hp), lambda i, l: (0, 0)),
            pl.BlockSpec((1, hp, hp), lambda i, l: (l, 0, 0)),   # streamed slab
            pl.BlockSpec((1, 1, hp), lambda i, l: (l, 0, 0)),
            pl.BlockSpec((hp, op), lambda i, l: (0, 0)),
            pl.BlockSpec((1, op), lambda i, l: (0, 0)),
        ]
        out_spec = pl.BlockSpec((batch_tile, op), lambda i, l: (i, 0))
        scratch_shapes = [pltpu.VMEM((batch_tile, hp), jnp.float32)]
        kernel = _mlp_streamed_kernel
        operands = (x_p, prepared["w_in"], prepared["b_in"],
                    prepared["w_hid"], prepared["b_hid"],
                    prepared["w_out"], prepared["b_out"])
        dim_sem = ("parallel", "arbitrary")
    else:
        grid = (steps,)
        in_specs = [
            pl.BlockSpec((batch_tile, input_dim), lambda i: (i, 0)),
            pl.BlockSpec((input_dim, hp), lambda i: (0, 0)),
            pl.BlockSpec((1, hp), lambda i: (0, 0)),
            pl.BlockSpec((hp, op), lambda i: (0, 0)),
            pl.BlockSpec((1, op), lambda i: (0, 0)),
        ]
        out_spec = pl.BlockSpec((batch_tile, op), lambda i: (i, 0))
        scratch_shapes = []
        kernel = _mlp_no_hidden_kernel
        operands = (x_p, prepared["w_in"], prepared["b_in"],
                    prepared["w_out"], prepared["b_out"])
        dim_sem = ("parallel",)

    out_padded = pl.pallas_call(
        kernel,
        out_shape=jax.ShapeDtypeStruct((bp, op), out_dtype),
        grid_spec=pltpu.PrefetchScalarGridSpec(
            num_scalar_prefetch=0,
            grid=grid,
            in_specs=in_specs,
            out_specs=out_spec,
            scratch_shapes=scratch_shapes,
        ),
        compiler_params=pltpu.CompilerParams(
            dimension_semantics=dim_sem,
            vmem_limit_bytes=vmem_limit,
        ),
        cost_estimate=cost,
    )(*operands)

    # slice padded batch rows and padded output lanes back off
    return out_padded[:B, :prepared["output_dim"]]


# ----------------------------------------------------------------------------
# Parameter init (mimics torch.nn.Linear default U(-1/sqrt(fan_in), ..)) & ref
# ----------------------------------------------------------------------------
def init_params(key, hidden_layers, hidden_dim, input_dim=1, output_dim=1,
                dtype=jnp.float32):
    def linear_init(k, fan_in, fan_out):
        kw, kb = jax.random.split(k)
        bound = 1.0 / jnp.sqrt(jnp.asarray(fan_in, dtype))
        # stored pre-transposed: [fan_in, fan_out]
        w_t = jax.random.uniform(kw, (fan_in, fan_out), dtype, -bound, bound)
        b = jax.random.uniform(kb, (1, fan_out), dtype, -bound, bound)
        return w_t, b

    keys = jax.random.split(key, hidden_layers + 1)
    w_in_t, b_in = linear_init(keys[0], input_dim, hidden_dim)

    w_hid_list, b_hid_list = [], []
    for i in range(hidden_layers - 1):
        w_t, b = linear_init(keys[1 + i], hidden_dim, hidden_dim)
        w_hid_list.append(w_t)
        b_hid_list.append(b)
    if hidden_layers - 1 > 0:
        w_hid_t = jnp.stack(w_hid_list, axis=0)              # [L-1, H, H]
        b_hid = jnp.stack(b_hid_list, axis=0)                # [L-1, 1, H]
    else:
        w_hid_t = jnp.zeros((0, hidden_dim, hidden_dim), dtype)
        b_hid = jnp.zeros((0, 1, hidden_dim), dtype)

    w_out_t, b_out = linear_init(keys[-1], hidden_dim, output_dim)
    return (w_in_t, b_in, w_hid_t, b_hid, w_out_t, b_out)


def feedforward_ref(x, params):
    """Pure-JAX reference (mirrors the PyTorch forward exactly)."""
    w_in_t, b_in, w_hid_t, b_hid, w_out_t, b_out = params
    h = jnp.tanh(x @ w_in_t + b_in)
    for l in range(w_hid_t.shape[0]):
        h = jnp.tanh(h @ w_hid_t[l] + b_hid[l])
    return h @ w_out_t + b_out


if __name__ == "__main__":
    key = jax.random.PRNGKey(0)

    # --- main config: FeedForwardNetwork(hidden_layers=3, hidden_dim=32) -----
    hidden_layers, hidden_dim, input_dim, output_dim = 3, 32, 1, 1
    batch = 512
    kx, kp, kx2, kp2 = jax.random.split(key, 4)
    x = jax.random.normal(kx, (batch, input_dim), jnp.float32)
    params = init_params(kp, hidden_layers, hidden_dim, input_dim, output_dim)
    prepared = prepare_params(params)          # padding done once, not per call

    out = feedforward_pallas(x, prepared)
    out = jax.block_until_ready(out)
    ref = feedforward_ref(x, params)
    assert out.shape == (batch, output_dim)
    assert jnp.allclose(out, ref, atol=2e-5, rtol=2e-5), "mismatch (streamed)"

    # --- edge case: hidden_layers=1 (no hidden stack), odd small batch -------
    x2 = jax.random.normal(kx2, (37, 1), jnp.float32)
    params2 = init_params(kp2, 1, 32, 1, 1)
    prepared2 = prepare_params(params2)
    out2 = jax.block_until_ready(feedforward_pallas(x2, prepared2))
    ref2 = feedforward_ref(x2, params2)
    assert out2.shape == (37, 1)
    assert jnp.allclose(out2, ref2, atol=2e-5, rtol=2e-5), "mismatch (no-hidden)"

    print("KERNEL_OK")
</pallas_src>

<mosaic_0001>
module attributes {stable_mosaic.version = 11 : i64} {
  func.func @_mlp_streamed_kernel(%arg0: i32, %arg1: i32, %arg2: memref<512x1xf32, #tpu.memory_space<vmem>>, %arg3: memref<1x128xf32, #tpu.memory_space<vmem>>, %arg4: memref<1x128xf32, #tpu.memory_space<vmem>>, %arg5: memref<1x128x128xf32, #tpu.memory_space<vmem>>, %arg6: memref<1x1x128xf32, #tpu.memory_space<vmem>>, %arg7: memref<128x128xf32, #tpu.memory_space<vmem>>, %arg8: memref<1x128xf32, #tpu.memory_space<vmem>>, %arg9: memref<512x128xf32, #tpu.memory_space<vmem>>, %arg10: memref<512x128xf32, #tpu.memory_space<vmem>>) attributes {dimension_semantics = [#tpu.dimension_semantics<parallel>, #tpu.dimension_semantics<arbitrary>], iteration_bounds = array<i64: 1, 2>, scalar_prefetch = 0 : i64, scratch_operands = 1 : i64, tpu.core_type = #tpu.core_type<tc>, window_params = [{transform_indices = @transform_0, window_bounds = array<i64: 512, 1>}, {pipeline_mode = #tpu.pipeline_mode<synchronous>, transform_indices = @transform_1, window_bounds = array<i64: 1, 128>}, {pipeline_mode = #tpu.pipeline_mode<synchronous>, transform_indices = @transform_2, window_bounds = array<i64: 1, 128>}, {transform_indices = @transform_3, window_bounds = array<i64: 1, 128, 128>}, {transform_indices = @transform_4, window_bounds = array<i64: 1, 1, 128>}, {pipeline_mode = #tpu.pipeline_mode<synchronous>, transform_indices = @transform_5, window_bounds = array<i64: 128, 128>}, {pipeline_mode = #tpu.pipeline_mode<synchronous>, transform_indices = @transform_6, window_bounds = array<i64: 1, 128>}, {transform_indices = @transform_7, window_bounds = array<i64: 512, 128>}]} {
    %c0_i32 = arith.constant 0 : i32
    %0 = arith.cmpi eq, %arg1, %c0_i32 : i32
    %1 = arith.extui %0 : i1 to i32
    %c0_i32_0 = arith.constant 0 : i32
    %2 = arith.cmpi ne, %1, %c0_i32_0 : i32
    scf.if %2 {
      %c0_11 = arith.constant 0 : index
      %c0_12 = arith.constant 0 : index
      %16 = vector.load %arg2[%c0_11, %c0_12] : memref<512x1xf32, #tpu.memory_space<vmem>>, vector<512x1xf32>
      %c0_13 = arith.constant 0 : index
      %c0_14 = arith.constant 0 : index
      %17 = vector.load %arg3[%c0_13, %c0_14] : memref<1x128xf32, #tpu.memory_space<vmem>>, vector<1x128xf32>
      %c0_15 = arith.constant 0 : index
      %c0_16 = arith.constant 0 : index
      %18 = vector.load %arg4[%c0_15, %c0_16] : memref<1x128xf32, #tpu.memory_space<vmem>>, vector<1x128xf32>
      %19 = vector.broadcast %16 : vector<512x1xf32> to vector<512x128xf32>
      %20 = vector.broadcast %17 : vector<1x128xf32> to vector<512x128xf32>
      %21 = arith.mulf %19, %20 : vector<512x128xf32>
      %22 = vector.broadcast %18 : vector<1x128xf32> to vector<512x128xf32>
      %23 = arith.addf %21, %22 : vector<512x128xf32>
      %24 = math.tanh %23 : vector<512x128xf32>
      %c0_17 = arith.constant 0 : index
      %c0_18 = arith.constant 0 : index
      %25 = vector.load %arg10[%c0_17, %c0_18] : memref<512x128xf32, #tpu.memory_space<vmem>>, vector<512x128xf32>
      tpu.vector_store %arg10[%c0_17, %c0_18], %24 {strides = array<i32>} : memref<512x128xf32, #tpu.memory_space<vmem>>, vector<512x128xf32>,
    } else {
    }
    %c0 = arith.constant 0 : index
    %c0_1 = arith.constant 0 : index
    %c0_2 = arith.constant 0 : index
    %3 = vector.load %arg5[%c0, %c0_1, %c0_2] : memref<1x128x128xf32, #tpu.memory_space<vmem>>, vector<1x128x128xf32>
    %4 = vector.shape_cast %3 : vector<1x128x128xf32> to vector<128x128xf32>
    %c0_3 = arith.constant 0 : index
    %c0_4 = arith.constant 0 : index
    %c0_5 = arith.constant 0 : index
    %5 = vector.load %arg6[%c0_3, %c0_4, %c0_5] : memref<1x1x128xf32, #tpu.memory_space<vmem>>, vector<1x1x128xf32>
    %6 = vector.shape_cast %5 : vector<1x1x128xf32> to vector<1x128xf32>
    %c0_6 = arith.constant 0 : index
    %c0_7 = arith.constant 0 : index
    %7 = vector.load %arg10[%c0_6, %c0_7] : memref<512x128xf32, #tpu.memory_space<vmem>>, vector<512x128xf32>
    %cst = arith.constant dense<0.000000e+00> : vector<512x128xf32>
    %8 = tpu.matmul %7, %4, %cst {dimension_numbers = #tpu.dot_dimension_numbers<[1], [0], [0], [1], [0, 0, 1, 1], [], []>} : vector<512x128xf32>, vector<128x128xf32>, vector<512x128xf32> -> vector<512x128xf32>
    %9 = vector.broadcast %6 : vector<1x128xf32> to vector<512x128xf32>
    %10 = arith.addf %8, %9 : vector<512x128xf32>
    %11 = math.tanh %10 : vector<512x128xf32>
    %c0_8 = arith.constant 0 : index
    %c0_9 = arith.constant 0 : index
    %12 = vector.load %arg10[%c0_8, %c0_9] : memref<512x128xf32, #tpu.memory_space<vmem>>, vector<512x128xf32>
    tpu.vector_store %arg10[%c0_8, %c0_9], %11 {strides = array<i32>} : memref<512x128xf32, #tpu.memory_space<vmem>>, vector<512x128xf32>,
    %c1_i32 = arith.constant 1 : i32
    %13 = arith.cmpi eq, %arg1, %c1_i32 : i32
    %14 = arith.extui %13 : i1 to i32
    %c0_i32_10 = arith.constant 0 : i32
    %15 = arith.cmpi ne, %14, %c0_i32_10 : i32
    scf.if %15 {
      %c0_11 = arith.constant 0 : index
      %c0_12 = arith.constant 0 : index
      %16 = vector.load %arg10[%c0_11, %c0_12] : memref<512x128xf32, #tpu.memory_space<vmem>>, vector<512x128xf32>
      %c0_13 = arith.constant 0 : index
      %c0_14 = arith.constant 0 : index
      %17 = vector.load %arg7[%c0_13, %c0_14] : memref<128x128xf32, #tpu.memory_space<vmem>>, vector<128x128xf32>
      %c0_15 = arith.constant 0 : index
      %c0_16 = arith.constant 0 : index
      %18 = vector.load %arg8[%c0_15, %c0_16] : memref<1x128xf32, #tpu.memory_space<vmem>>, vector<1x128xf32>
      %cst_17 = arith.constant dense<0.000000e+00> : vector<512x128xf32>
      %19 = tpu.matmul %16, %17, %cst_17 {dimension_numbers = #tpu.dot_dimension_numbers<[1], [0], [0], [1], [0, 0, 1, 1], [], []>} : vector<512x128xf32>, vector<128x128xf32>, vector<512x128xf32> -> vector<512x128xf32>
      %20 = vector.broadcast %18 : vector<1x128xf32> to vector<512x128xf32>
      %21 = arith.addf %19, %20 : vector<512x128xf32>
      %c0_18 = arith.constant 0 : index
      %c0_19 = arith.constant 0 : index
      %22 = vector.load %arg9[%c0_18, %c0_19] : memref<512x128xf32, #tpu.memory_space<vmem>>, vector<512x128xf32>
      tpu.vector_store %arg9[%c0_18, %c0_19], %21 {strides = array<i32>} : memref<512x128xf32, #tpu.memory_space<vmem>>, vector<512x128xf32>,
    } else {
    }
    return
  }
  func.func @transform_0(%arg0: i32, %arg1: i32) -> (i32, i32) {
    %c0_i32 = arith.constant 0 : i32
    %c0_i32_0 = arith.constant 0 : i32
    return %arg0, %c0_i32 : i32, i32
  }
  func.func @transform_1(%arg0: i32, %arg1: i32) -> (i32, i32) {
    %c0_i32 = arith.constant 0 : i32
    %c0_i32_0 = arith.constant 0 : i32
    %c0_i32_1 = arith.constant 0 : i32
    return %c0_i32, %c0_i32_0 : i32, i32
  }
  func.func @transform_2(%arg0: i32, %arg1: i32) -> (i32, i32) {
    %c0_i32 = arith.constant 0 : i32
    %c0_i32_0 = arith.constant 0 : i32
    %c0_i32_1 = arith.constant 0 : i32
    return %c0_i32, %c0_i32_0 : i32, i32
  }
  func.func @transform_3(%arg0: i32, %arg1: i32) -> (i32, i32, i32) {
    %c0_i32 = arith.constant 0 : i32
    %c0_i32_0 = arith.constant 0 : i32
    %c0_i32_1 = arith.constant 0 : i32
    return %arg1, %c0_i32, %c0_i32_0 : i32, i32, i32
  }
  func.func @transform_4(%arg0: i32, %arg1: i32) -> (i32, i32, i32) {
    %c0_i32 = arith.constant 0 : i32
    %c0_i32_0 = arith.constant 0 : i32
    %c0_i32_1 = arith.constant 0 : i32
    return %arg1, %c0_i32, %c0_i32_0 : i32, i32, i32
  }
  func.func @transform_5(%arg0: i32, %arg1: i32) -> (i32, i32) {
    %c0_i32 = arith.constant 0 : i32
    %c0_i32_0 = arith.constant 0 : i32
    %c0_i32_1 = arith.constant 0 : i32
    return %c0_i32, %c0_i32_0 : i32, i32
  }
  func.func @transform_6(%arg0: i32, %arg1: i32) -> (i32, i32) {
    %c0_i32 = arith.constant 0 : i32
    %c0_i32_0 = arith.constant 0 : i32
    %c0_i32_1 = arith.constant 0 : i32
    return %c0_i32, %c0_i32_0 : i32, i32
  }
  func.func @transform_7(%arg0: i32, %arg1: i32) -> (i32, i32) {
    %c0_i32 = arith.constant 0 : i32
    %c0_i32_0 = arith.constant 0 : i32
    return %arg0, %c0_i32 : i32, i32
  }
}

</mosaic_0001>

<llo_original>
// kernel: tpu_custom_call.1
$region0: #{tpu_custom_call.1}
  #allocation0 [shape = 'u32[]', space=smem, size = 0x4, offset = 0x4, fixed_abs, tag = 'smem constant byte address 0x4 - core index']
  #allocation1 [shape = 'u32[72,128]{1,0:T(1,128)}', space=vmem, size = 0x9000, scoped, tag = 'internal scratch']
  #allocation2 [shape = 'f32[512,128]{1,0:T(8,128)}', space=vmem, size = 0x40000, scoped, tag = 'scratch operand']
  %s0 = inlined_call_operand.vmem [shape: f32[512,1], index: 0, kind: input, shape index: {}]
  %s1 = inlined_call_operand.vmem [shape: f32[1,128], index: 1, kind: input, shape index: {}]
  %s2 = inlined_call_operand.vmem [shape: f32[1,128], index: 2, kind: input, shape index: {}]
  %s3 = inlined_call_operand.vmem [shape: f32[2,128,128], index: 3, kind: input, shape index: {}]
  %s4 = inlined_call_operand.vmem [shape: f32[2,1,128], index: 4, kind: input, shape index: {}]
  %s5 = inlined_call_operand.vmem [shape: f32[128,128], index: 5, kind: input, shape index: {}]
  %s6 = inlined_call_operand.vmem [shape: f32[1,128], index: 6, kind: input, shape index: {}]
  %s7 = inlined_call_operand.hbm [shape: f32[512,128], index: 7, kind: output, shape index: {}]
  %s8 = sld [smem:[#allocation0]]
  $region69: #{tpu_custom_call.1} parent=0
    _
  %s10 = ssub.s32 1, %s8
  %s11 = scalar_select 0, %s10, %s8
  $region1: #{tpu_custom_call.1} parent=0
    #allocation3 [shape = 'u8[262144]{0}', space=vmem, size = 0x40000, scoped, tag = 'output window, operand 0, single buffered']
    #allocation4 [shape = 's32[2]{0}', space=sflag, size = 0x8, scoped, tag = 'scoped memory for tpu_custom_call.1']
    %12 = vsyncpa [#allocation4], 0
    loop: start=0, step=1, limit=4
    $region2: #{tpu_custom_call.1} parent=1 // loop_pre_header
      _
    $region3: #{tpu_custom_call.1} parent=1 // loop_header
      %s14 = sphi 0, %s18
      %p15 = scmp.ge.s32.totalorder %s14, 4
      %s21 = sphi 0, %s33
      %s22 = sphi 0, %s29
      %s23 = sphi 0, %s21
      %s24 = sphi 0, %s22
      %s25 = sphi 0, %s23
      %s26 = sphi 0, %s24
      %s36 = sphi 0, %s38
      %s39 = sphi 0, %s36
      %s40 = sphi 0, %s39
      %s56 = sphi 0, %s40
      %s60 = sphi 0, %s60
      %s62 = sphi 0, %s60
      %s63 = sphi 0, %s62
      %s77 = sphi 0, %s63
      %s81 = sphi 0, %s81
      %s83 = sphi 0, %s81
      %s84 = sphi 0, %s83
      %s98 = sphi 0, %s84
      %s104 = sphi 0, %s106
      %s107 = sphi 0, %s104
      %s108 = sphi 0, %s107
      %s124 = sphi 0, %s108
      %s130 = sphi 0, %s132
      %s133 = sphi 0, %s130
      %s134 = sphi 0, %s133
      %s150 = sphi 0, %s134
      %s154 = sphi 0, %s154
      %s156 = sphi 0, %s154
      %s157 = sphi 0, %s156
      %s171 = sphi 0, %s157
      %s175 = sphi 0, %s175
      %s177 = sphi 0, %s175
      %s178 = sphi 0, %s177
      %s192 = sphi 0, %s178
      %s198 = sphi 0, %s200
      %s201 = sphi 0, %s198
      %s202 = sphi 0, %s201
      %s218 = sphi 0, %s202
    $region4: #{tpu_custom_call.1} parent=1 // loop_header_branch
      %17 = sbr.rel (%p15) target = $region8
    $region5: #{tpu_custom_call.1} parent=1 // loop_body
      %s19 = ssub.s32 %s14, 1
      %s20 = ssub.s32 %s14, 2
      %s27 = sadd.s32 1, %s22
      %p28 = scmp.ge.s32.totalorder %s27, 2
      %s29 = scalar_select %p28, 0, %s27
      %s30 = sadd.s32 1, %s21
      %s31 = scalar_select %p28, %s30, %s21
      %p32 = scmp.ge.s32.totalorder %s31, 1
      %s33 = scalar_select %p32, 0, %s31
      %s34 = ssub.s32 %s21, %s33
      %p35 = scmp.eq.s32.totalorder %s34, 0
      %s37 = sadd.s32 %s36, 1
      %s38 = scalar_select %p35, %s36, %s37
      %p41 = pneg %p35
      %p42 = scmp.eq.s32.totalorder %s14, 1
      %p43 = por %p41, %p42
      %p44 = scmp.ne.s32.totalorder %s36, %s39
      %p45 = scmp.eq.s32.totalorder %s14, 0
      %p46 = por %p44, %p45
      %p47 = scmp.ne.s32.totalorder %s36, %s39
      %p48 = scmp.eq.s32.totalorder %s19, 1
      %p49 = por %p47, %p48
      %p50 = scmp.ne.s32.totalorder %s39, %s40
      %p51 = scmp.eq.s32.totalorder %s19, 0
      %p52 = por %p50, %p51
      %p53 = scmp.ne.s32.totalorder %s39, %s40
      %p54 = scmp.eq.s32.totalorder %s20, 1
      %p55 = por %p53, %p54
      %p57 = scmp.ne.s32.totalorder %s40, %s56
      %p58 = scmp.eq.s32.totalorder %s20, 0
      %p59 = por %p57, %p58
      %s61 = sadd.s32 %s60, 1
      %p64 = scmp.eq.s32.totalorder %s14, 1
      %p65 = scmp.ne.s32.totalorder %s60, %s62
      %p66 = scmp.eq.s32.totalorder %s14, 0
      %p67 = por %p65, %p66
      %p68 = scmp.ne.s32.totalorder %s60, %s62
      %p69 = scmp.eq.s32.totalorder %s19, 1
      %p70 = por %p68, %p69
      %p71 = scmp.ne.s32.totalorder %s62, %s63
      %p72 = scmp.eq.s32.totalorder %s19, 0
      %p73 = por %p71, %p72
      %p74 = scmp.ne.s32.totalorder %s62, %s63
      %p75 = scmp.eq.s32.totalorder %s20, 1
      %p76 = por %p74, %p75
      %p78 = scmp.ne.s32.totalorder %s63, %s77
      %p79 = scmp.eq.s32.totalorder %s20, 0
      %p80 = por %p78, %p79
      %s82 = sadd.s32 %s81, 1
      %p85 = scmp.eq.s32.totalorder %s14, 1
      %p86 = scmp.ne.s32.totalorder %s81, %s83
      %p87 = scmp.eq.s32.totalorder %s14, 0
      %p88 = por %p86, %p87
      %p89 = scmp.ne.s32.totalorder %s81, %s83
      %p90 = scmp.eq.s32.totalorder %s19, 1
      %p91 = por %p89, %p90
      %p92 = scmp.ne.s32.totalorder %s83, %s84
      %p93 = scmp.eq.s32.totalorder %s19, 0
      %p94 = por %p92, %p93
      %p95 = scmp.ne.s32.totalorder %s83, %s84
      %p96 = scmp.eq.s32.totalorder %s20, 1
      %p97 = por %p95, %p96
      %p99 = scmp.ne.s32.totalorder %s84, %s98
      %p100 = scmp.eq.s32.totalorder %s20, 0
      %p101 = por %p99, %p100
      %s102 = ssub.s32 %s22, %s29
      %p103 = scmp.eq.s32.totalorder %s102, 0
      %s105 = sadd.s32 %s104, 1
      %s106 = scalar_select %p103, %s104, %s105
      %p109 = pneg %p103
      %p110 = scmp.eq.s32.totalorder %s14, 1
      %p111 = por %p109, %p110
      %p112 = scmp.ne.s32.totalorder %s104, %s107
      %p113 = scmp.eq.s32.totalorder %s14, 0
      %p114 = por %p112, %p113
      %p115 = scmp.ne.s32.totalorder %s104, %s107
      %p116 = scmp.eq.s32.totalorder %s19, 1
      %p117 = por %p115, %p116
      %p118 = scmp.ne.s32.totalorder %s107, %s108
      %p119 = scmp.eq.s32.totalorder %s19, 0
      %p120 = por %p118, %p119
      %p121 = scmp.ne.s32.totalorder %s107, %s108
      %p122 = scmp.eq.s32.totalorder %s20, 1
      %p123 = por %p121, %p122
      %p125 = scmp.ne.s32.totalorder %s108, %s124
      %p126 = scmp.eq.s32.totalorder %s20, 0
      %p127 = por %p125, %p126
      %s128 = ssub.s32 %s22, %s29
      %p129 = scmp.eq.s32.totalorder %s128, 0
      %s131 = sadd.s32 %s130, 1
      %s132 = scalar_select %p129, %s130, %s131
      %p135 = pneg %p129
      %p136 = scmp.eq.s32.totalorder %s14, 1
      %p137 = por %p135, %p136
      %p138 = scmp.ne.s32.totalorder %s130, %s133
      %p139 = scmp.eq.s32.totalorder %s14, 0
      %p140 = por %p138, %p139
      %p141 = scmp.ne.s32.totalorder %s130, %s133
      %p142 = scmp.eq.s32.totalorder %s19, 1
      %p143 = por %p141, %p142
      %p144 = scmp.ne.s32.totalorder %s133, %s134
      %p145 = scmp.eq.s32.totalorder %s19, 0
      %p146 = por %p144, %p145
      %p147 = scmp.ne.s32.totalorder %s133, %s134
      %p148 = scmp.eq.s32.totalorder %s20, 1
      %p149 = por %p147, %p148
      %p151 = scmp.ne.s32.totalorder %s134, %s150
      %p152 = scmp.eq.s32.totalorder %s20, 0
      %p153 = por %p151, %p152
      %s155 = sadd.s32 %s154, 1
      %p158 = scmp.eq.s32.totalorder %s14, 1
      %p159 = scmp.ne.s32.totalorder %s154, %s156
      %p160 = scmp.eq.s32.totalorder %s14, 0
      %p161 = por %p159, %p160
      %p162 = scmp.ne.s32.totalorder %s154, %s156
      %p163 = scmp.eq.s32.totalorder %s19, 1
      %p164 = por %p162, %p163
      %p165 = scmp.ne.s32.totalorder %s156, %s157
      %p166 = scmp.eq.s32.totalorder %s19, 0
      %p167 = por %p165, %p166
      %p168 = scmp.ne.s32.totalorder %s156, %s157
      %p169 = scmp.eq.s32.totalorder %s20, 1
      %p170 = por %p168, %p169
      %p172 = scmp.ne.s32.totalorder %s157, %s171
      %p173 = scmp.eq.s32.totalorder %s20, 0
      %p174 = por %p172, %p173
      %s176 = sadd.s32 %s175, 1
      %p179 = scmp.eq.s32.totalorder %s14, 1
      %p180 = scmp.ne.s32.totalorder %s175, %s177
      %p181 = scmp.eq.s32.totalorder %s14, 0
      %p182 = por %p180, %p181
      %p183 = scmp.ne.s32.totalorder %s175, %s177
      %p184 = scmp.eq.s32.totalorder %s19, 1
      %p185 = por %p183, %p184
      %p186 = scmp.ne.s32.totalorder %s177, %s178
      %p187 = scmp.eq.s32.totalorder %s19, 0
      %p188 = por %p186, %p187
      %p189 = scmp.ne.s32.totalorder %s177, %s178
      %p190 = scmp.eq.s32.totalorder %s20, 1
      %p191 = por %p189, %p190
      %p193 = scmp.ne.s32.totalorder %s178, %s192
      %p194 = scmp.eq.s32.totalorder %s20, 0
      %p195 = por %p193, %p194
      %s196 = ssub.s32 %s21, %s33
      %p197 = scmp.eq.s32.totalorder %s196, 0
      %s199 = sadd.s32 %s198, 1
      %s200 = scalar_select %p197, %s198, %s199
      %p203 = pneg %p197
      %p204 = scmp.eq.s32.totalorder %s14, 1
      %p205 = por %p203, %p204
      %p206 = scmp.ne.s32.totalorder %s198, %s201
      %p207 = scmp.eq.s32.totalorder %s14, 0
      %p208 = por %p206, %p207
      %p209 = scmp.ne.s32.totalorder %s198, %s201
      %p210 = scmp.eq.s32.totalorder %s19, 1
      %p211 = por %p209, %p210
      %p212 = scmp.ne.s32.totalorder %s201, %s202
      %p213 = scmp.eq.s32.totalorder %s19, 0
      %p214 = por %p212, %p213
      %p215 = scmp.ne.s32.totalorder %s201, %s202
      %p216 = scmp.eq.s32.totalorder %s20, 1
      %p217 = por %p215, %p216
      %p219 = scmp.ne.s32.totalorder %s202, %s218
      %p220 = scmp.eq.s32.totalorder %s20, 0
      %p221 = por %p219, %p220
      %p222 = scmp.le.s32.totalorder 1, %s14
      %p223 = scmp.lt.s32.totalorder %s14, 3
      %p224 = pnand %p222, %p223
      %p225 = pneg %p224
      // Predicated region
      $region9: #{tpu_custom_call.1} parent=5 // pred_check
        _
      $region10: #{tpu_custom_call.1} parent=5 // pred_check_branch
        %227 = sbr.rel (%p224) target = $region12
      $region11: #{tpu_custom_call.1} parent=5 // pred_region
        %s228 = ssub.s32 %s14, 1
        // Predicated region
        $region13: #{tpu_custom_call.1} parent=11 // pred_check
          %p229 = pneg %p52
        $region14: #{tpu_custom_call.1} parent=11 // pred_check_branch
          %231 = sbr.rel (%p229) target = $region16
        $region15: #{tpu_custom_call.1} parent=11 // pred_region
          %s232 = smul.u32 64, %s23
          %p233 = scmp.lt.s32.totalorder %s232, 63
          %s234 = scalar_select %p233, %s232, 63
          %s235 = smul.addr %s234, 8
          %s236 = scalar_lea.vmem %s0, %s235
          %s237 = smul.u32 64, %s23
        $region16: #{tpu_custom_call.1} parent=11 // pred_fallthru
          _
        // Predicated region
        $region17: #{tpu_custom_call.1} parent=11 // pred_check
          %p238 = pneg %p73
        $region18: #{tpu_custom_call.1} parent=11 // pred_check_branch
          %240 = sbr.rel (%p238) target = $region20
        $region19: #{tpu_custom_call.1} parent=11 // pred_region
          _
        $region20: #{tpu_custom_call.1} parent=11 // pred_fallthru
          _
        // Predicated region
        $region21: #{tpu_custom_call.1} parent=11 // pred_check
          %p241 = pneg %p94
        $region22: #{tpu_custom_call.1} parent=11 // pred_check_branch
          %243 = sbr.rel (%p241) target = $region24
        $region23: #{tpu_custom_call.1} parent=11 // pred_region
          _
        $region24: #{tpu_custom_call.1} parent=11 // pred_fallthru
          _
        // Predicated region
        $region25: #{tpu_custom_call.1} parent=11 // pred_check
          %p244 = pneg %p167
        $region26: #{tpu_custom_call.1} parent=11 // pred_check_branch
          %246 = sbr.rel (%p244) target = $region28
        $region27: #{tpu_custom_call.1} parent=11 // pred_region
          _
        $region28: #{tpu_custom_call.1} parent=11 // pred_fallthru
          _
        // Predicated region
        $region29: #{tpu_custom_call.1} parent=11 // pred_check
          %p247 = pneg %p188
        $region30: #{tpu_custom_call.1} parent=11 // pred_check_branch
          %249 = sbr.rel (%p247) target = $region32
        $region31: #{tpu_custom_call.1} parent=11 // pred_region
          _
        $region32: #{tpu_custom_call.1} parent=11 // pred_fallthru
          _
      $region12: #{tpu_custom_call.1} parent=5 // pred_fallthru
        _
      %p250 = scmp.lt.s32.totalorder %s14, 2
      // Predicated region
      $region33: #{tpu_custom_call.1} parent=5 // pred_check
        %p251 = pneg %p250
      $region34: #{tpu_custom_call.1} parent=5 // pred_check_branch
        %253 = sbr.rel (%p251) target = $region36
      $region35: #{tpu_custom_call.1} parent=5 // pred_region
        // Predicated region
        $region37: #{tpu_custom_call.1} parent=35 // pred_check
          %p254 = pneg %p114
        $region38: #{tpu_custom_call.1} parent=35 // pred_check_branch
          %256 = sbr.rel (%p254) target = $region40
        $region39: #{tpu_custom_call.1} parent=35 // pred_region
          %p257 = scmp.lt.s32.totalorder %s22, 1
          %s258 = scalar_select %p257, %s22, 1
          %s259 = smul.addr %s258, 16
          %s260 = smul.addr %s259, 8
          %s261 = scalar_lea.vmem %s3, %s260
        $region40: #{tpu_custom_call.1} parent=35 // pred_fallthru
          _
        // Predicated region
        $region41: #{tpu_custom_call.1} parent=35 // pred_check
          %p262 = pneg %p140
        $region42: #{tpu_custom_call.1} parent=35 // pred_check_branch
          %264 = sbr.rel (%p262) target = $region44
        $region43: #{tpu_custom_call.1} parent=35 // pred_region
          %p265 = scmp.lt.s32.totalorder %s22, 1
          %s266 = scalar_select %p265, %s22, 1
          %s267 = scalar_lea.vmem %s4, %s266
        $region44: #{tpu_custom_call.1} parent=35 // pred_fallthru
          _
      $region36: #{tpu_custom_call.1} parent=5 // pred_fallthru
        _
      %p268 = scmp.le.s32.totalorder 1, %s14
      %p269 = scmp.lt.s32.totalorder %s14, 3
      %p270 = pnand %p268, %p269
      %p271 = pneg %p270
      // Predicated region
      $region45: #{tpu_custom_call.1} parent=5 // pred_check
        _
      $region46: #{tpu_custom_call.1} parent=5 // pred_check_branch
        %273 = sbr.rel (%p270) target = $region48
      $region47: #{tpu_custom_call.1} parent=5 // pred_region
        %s274 = ssub.s32 %s14, 1
        %s275 = smul.u32 64, %s23
        %p276 = scmp.lt.s32.totalorder %s275, 63
        %s277 = scalar_select %p276, %s275, 63
        %s278 = smul.addr %s277, 8
        %s279 = scalar_lea.vmem %s0, %s278
        %p280 = pneg %p52
        %p281 = pneg %p49
        %p282 = pneg %p73
        %p283 = pneg %p70
        %p284 = pneg %p94
        %p285 = pneg %p91
        %p286 = scmp.lt.s32.totalorder %s24, 1
        %s287 = scalar_select %p286, %s24, 1
        %s288 = smul.addr %s287, 16
        %s289 = smul.addr %s288, 8
        %s290 = scalar_lea.vmem %s3, %s289
        %p291 = pneg %p120
        %p292 = pneg %p117
        %p293 = scmp.lt.s32.totalorder %s24, 1
        %s294 = scalar_select %p293, %s24, 1
        %s295 = scalar_lea.vmem %s4, %s294
        %p296 = pneg %p146
        %p297 = pneg %p143
        %p298 = pneg %p167
        %p299 = pneg %p164
        %p300 = pneg %p188
        %p301 = pneg %p185
        %p302 = pneg %p214
        %p303 = pneg %p211
        %s304 = smul.u32 64, %s23
        %p305 = scmp.lt.s32.totalorder %s304, 63
        %s306 = scalar_select %p305, %s304, 63
        %s307 = smul.addr %s306, 8
        %s308 = scalar_lea.vmem %s0, %s307
        %s309 = smul.u32 64, %s23
        %p310 = scmp.lt.s32.totalorder %s24, 1
        %s311 = scalar_select %p310, %s24, 1
        %s312 = smul.addr %s311, 16
        %s313 = smul.addr %s312, 8
        %s314 = scalar_lea.vmem %s3, %s313
        %p315 = scmp.lt.s32.totalorder %s24, 1
        %s316 = scalar_select %p315, %s24, 1
        %s317 = scalar_lea.vmem %s4, %s316
        %s318 = smul.u32 64, %s23
        %p319 = scmp.eq.s32.totalorder %s24, 0
        // Predicated region
        $region49: #{tpu_custom_call.1} parent=47 // pred_check
          %p320 = pneg %p319
        $region50: #{tpu_custom_call.1} parent=47 // pred_check_branch
          %322 = sbr.rel (%p320) target = $region52
        $region51: #{tpu_custom_call.1} parent=47 // pred_region
          %v323 = vld [vmem:[%s308] sm:$0xff]
          %v324 = vld [vmem:[%s308 + $0x8] sm:$0xff]
          %v325 = vld [vmem:[%s308 + $0x10] sm:$0xff]
          %v326 = vld [vmem:[%s308 + $0x18] sm:$0xff]
          %v327 = vld [vmem:[%s308 + $0x20] sm:$0xff]
          %v328 = vld [vmem:[%s308 + $0x28] sm:$0xff]
          %v329 = vld [vmem:[%s308 + $0x30] sm:$0xff]
          %v330 = vld [vmem:[%s308 + $0x38] sm:$0xff]
          %v331 = vld [vmem:[%s308 + $0x40] sm:$0xff]
          %v332 = vld [vmem:[%s308 + $0x48] sm:$0xff]
          %v333 = vld [vmem:[%s308 + $0x50] sm:$0xff]
          %v334 = vld [vmem:[%s308 + $0x58] sm:$0xff]
          %v335 = vld [vmem:[%s308 + $0x60] sm:$0xff]
          %v336 = vld [vmem:[%s308 + $0x68] sm:$0xff]
          %v337 = vld [vmem:[%s308 + $0x70] sm:$0xff]
          %v338 = vld [vmem:[%s308 + $0x78] sm:$0xff]
          %v339 = vld [vmem:[%s308 + $0x80] sm:$0xff]
          %v340 = vld [vmem:[%s308 + $0x88] sm:$0xff]
          %v341 = vld [vmem:[%s308 + $0x90] sm:$0xff]
          %v342 = vld [vmem:[%s308 + $0x98] sm:$0xff]
          %v343 = vld [vmem:[%s308 + $0xa0] sm:$0xff]
          %v344 = vld [vmem:[%s308 + $0xa8] sm:$0xff]
          %v345 = vld [vmem:[%s308 + $0xb0] sm:$0xff]
          %v346 = vld [vmem:[%s308 + $0xb8] sm:$0xff]
          %v347 = vld [vmem:[%s308 + $0xc0] sm:$0xff]
          %v348 = vld [vmem:[%s308 + $0xc8] sm:$0xff]
          %v349 = vld [vmem:[%s308 + $0xd0] sm:$0xff]
          %v350 = vld [vmem:[%s308 + $0xd8] sm:$0xff]
          %v351 = vld [vmem:[%s308 + $0xe0] sm:$0xff]
          %v352 = vld [vmem:[%s308 + $0xe8] sm:$0xff]
          %v353 = vld [vmem:[%s308 + $0xf0] sm:$0xff]
          %v354 = vld [vmem:[%s308 + $0xf8] sm:$0xff]
          %v355 = vld [vmem:[%s308 + $0x100] sm:$0xff]
          %v356 = vld [vmem:[%s308 + $0x108] sm:$0xff]
          %v357 = vld [vmem:[%s308 + $0x110] sm:$0xff]
          %v358 = vld [vmem:[%s308 + $0x118] sm:$0xff]
          %v359 = vld [vmem:[%s308 + $0x120] sm:$0xff]
          %v360 = vld [vmem:[%s308 + $0x128] sm:$0xff]
          %v361 = vld [vmem:[%s308 + $0x130] sm:$0xff]
          %v362 = vld [vmem:[%s308 + $0x138] sm:$0xff]
          %v363 = vld [vmem:[%s308 + $0x140] sm:$0xff]
          %v364 = vld [vmem:[%s308 + $0x148] sm:$0xff]
          %v365 = vld [vmem:[%s308 + $0x150] sm:$0xff]
          %v366 = vld [vmem:[%s308 + $0x158] sm:$0xff]
          %v367 = vld [vmem:[%s308 + $0x160] sm:$0xff]
          %v368 = vld [vmem:[%s308 + $0x168] sm:$0xff]
          %v369 = vld [vmem:[%s308 + $0x170] sm:$0xff]
          %v370 = vld [vmem:[%s308 + $0x178] sm:$0xff]
          %v371 = vld [vmem:[%s308 + $0x180] sm:$0xff]
          %v372 = vld [vmem:[%s308 + $0x188] sm:$0xff]
          %v373 = vld [vmem:[%s308 + $0x190] sm:$0xff]
          %v374 = vld [vmem:[%s308 + $0x198] sm:$0xff]
          %v375 = vld [vmem:[%s308 + $0x1a0] sm:$0xff]
          %v376 = vld [vmem:[%s308 + $0x1a8] sm:$0xff]
          %v377 = vld [vmem:[%s308 + $0x1b0] sm:$0xff]
          %v378 = vld [vmem:[%s308 + $0x1b8] sm:$0xff]
          %v379 = vld [vmem:[%s308 + $0x1c0] sm:$0xff]
          %v380 = vld [vmem:[%s308 + $0x1c8] sm:$0xff]
          %v381 = vld [vmem:[%s308 + $0x1d0] sm:$0xff]
          %v382 = vld [vmem:[%s308 + $0x1d8] sm:$0xff]
          %v383 = vld [vmem:[%s308 + $0x1e0] sm:$0xff]
          %v384 = vld [vmem:[%s308 + $0x1e8] sm:$0xff]
          %v385 = vld [vmem:[%s308 + $0x1f0] sm:$0xff]
          %v386 = vld [vmem:[%s308 + $0x1f8] sm:$0xff]
          %v387 = vld [vmem:[%s1] sm:$0x1]
          %v388 = vld [vmem:[%s2] sm:$0x1]
          %390 = vset.pattern.permute.xlu0 0
          %391 = vperm.xlu0 %390, %v323
          %v392 = vpop.permute.xlu0 %391
          %395 = vset.pattern.permute.xlu0 0
          %396 = vperm.xlu0 %395, %v324
          %v397 = vpop.permute.xlu0 %396
          %400 = vset.pattern.permute.xlu0 0
          %401 = vperm.xlu0 %400, %v325
          %v402 = vpop.permute.xlu0 %401
          %405 = vset.pattern.permute.xlu0 0
          %406 = vperm.xlu0 %405, %v326
          %v407 = vpop.permute.xlu0 %406
          %410 = vset.pattern.permute.xlu0 0
          %411 = vperm.xlu0 %410, %v327
          %v412 = vpop.permute.xlu0 %411
          %415 = vset.pattern.permute.xlu0 0
          %416 = vperm.xlu0 %415, %v328
          %v417 = vpop.permute.xlu0 %416
          %420 = vset.pattern.permute.xlu0 0
          %421 = vperm.xlu0 %420, %v329
          %v422 = vpop.permute.xlu0 %421
          %425 = vset.pattern.permute.xlu0 0
          %426 = vperm.xlu0 %425, %v330
          %v427 = vpop.permute.xlu0 %426
          %430 = vset.pattern.permute.xlu0 0
          %431 = vperm.xlu0 %430, %v331
          %v432 = vpop.permute.xlu0 %431
          %435 = vset.pattern.permute.xlu0 0
          %436 = vperm.xlu0 %435, %v332
          %v437 = vpop.permute.xlu0 %436
          %440 = vset.pattern.permute.xlu0 0
          %441 = vperm.xlu0 %440, %v333
          %v442 = vpop.permute.xlu0 %441
          %445 = vset.pattern.permute.xlu0 0
          %446 = vperm.xlu0 %445, %v334
          %v447 = vpop.permute.xlu0 %446
          %450 = vset.pattern.permute.xlu0 0
          %451 = vperm.xlu0 %450, %v335
          %v452 = vpop.permute.xlu0 %451
          %455 = vset.pattern.permute.xlu0 0
          %456 = vperm.xlu0 %455, %v336
          %v457 = vpop.permute.xlu0 %456
          %460 = vset.pattern.permute.xlu0 0
          %461 = vperm.xlu0 %460, %v337
          %v462 = vpop.permute.xlu0 %461
          %465 = vset.pattern.permute.xlu0 0
          %466 = vperm.xlu0 %465, %v338
          %v467 = vpop.permute.xlu0 %466
          %470 = vset.pattern.permute.xlu0 0
          %471 = vperm.xlu0 %470, %v339
          %v472 = vpop.permute.xlu0 %471
          %475 = vset.pattern.permute.xlu0 0
          %476 = vperm.xlu0 %475, %v340
          %v477 = vpop.permute.xlu0 %476
          %480 = vset.pattern.permute.xlu0 0
          %481 = vperm.xlu0 %480, %v341
          %v482 = vpop.permute.xlu0 %481
          %485 = vset.pattern.permute.xlu0 0
          %486 = vperm.xlu0 %485, %v342
          %v487 = vpop.permute.xlu0 %486
          %490 = vset.pattern.permute.xlu0 0
          %491 = vperm.xlu0 %490, %v343
          %v492 = vpop.permute.xlu0 %491
          %495 = vset.pattern.permute.xlu0 0
          %496 = vperm.xlu0 %495, %v344
          %v497 = vpop.permute.xlu0 %496
          %500 = vset.pattern.permute.xlu0 0
          %501 = vperm.xlu0 %500, %v345
          %v502 = vpop.permute.xlu0 %501
          %505 = vset.pattern.permute.xlu0 0
          %506 = vperm.xlu0 %505, %v346
          %v507 = vpop.permute.xlu0 %506
          %510 = vset.pattern.permute.xlu0 0
          %511 = vperm.xlu0 %510, %v347
          %v512 = vpop.permute.xlu0 %511
          %515 = vset.pattern.permute.xlu0 0
          %516 = vperm.xlu0 %515, %v348
          %v517 = vpop.permute.xlu0 %516
          %520 = vset.pattern.permute.xlu0 0
          %521 = vperm.xlu0 %520, %v349
          %v522 = vpop.permute.xlu0 %521
          %525 = vset.pattern.permute.xlu0 0
          %526 = vperm.xlu0 %525, %v350
          %v527 = vpop.permute.xlu0 %526
          %530 = vset.pattern.permute.xlu0 0
          %531 = vperm.xlu0 %530, %v351
          %v532 = vpop.permute.xlu0 %531
          %535 = vset.pattern.permute.xlu0 0
          %536 = vperm.xlu0 %535, %v352
          %v537 = vpop.permute.xlu0 %536
          %540 = vset.pattern.permute.xlu0 0
          %541 = vperm.xlu0 %540, %v353
          %v542 = vpop.permute.xlu0 %541
          %545 = vset.pattern.permute.xlu0 0
          %546 = vperm.xlu0 %545, %v354
          %v547 = vpop.permute.xlu0 %546
          %550 = vset.pattern.permute.xlu0 0
          %551 = vperm.xlu0 %550, %v355
          %v552 = vpop.permute.xlu0 %551
          %555 = vset.pattern.permute.xlu0 0
          %556 = vperm.xlu0 %555, %v356
          %v557 = vpop.permute.xlu0 %556
          %560 = vset.pattern.permute.xlu0 0
          %561 = vperm.xlu0 %560, %v357
          %v562 = vpop.permute.xlu0 %561
          %565 = vset.pattern.permute.xlu0 0
          %566 = vperm.xlu0 %565, %v358
          %v567 = vpop.permute.xlu0 %566
          %570 = vset.pattern.permute.xlu0 0
          %571 = vperm.xlu0 %570, %v359
          %v572 = vpop.permute.xlu0 %571
          %575 = vset.pattern.permute.xlu0 0
          %576 = vperm.xlu0 %575, %v360
          %v577 = vpop.permute.xlu0 %576
          %580 = vset.pattern.permute.xlu0 0
          %581 = vperm.xlu0 %580, %v361
          %v582 = vpop.permute.xlu0 %581
          %585 = vset.pattern.permute.xlu0 0
          %586 = vperm.xlu0 %585, %v362
          %v587 = vpop.permute.xlu0 %586
          %590 = vset.pattern.permute.xlu0 0
          %591 = vperm.xlu0 %590, %v363
          %v592 = vpop.permute.xlu0 %591
          %595 = vset.pattern.permute.xlu0 0
          %596 = vperm.xlu0 %595, %v364
          %v597 = vpop.permute.xlu0 %596
          %600 = vset.pattern.permute.xlu0 0
          %601 = vperm.xlu0 %600, %v365
          %v602 = vpop.permute.xlu0 %601
          %605 = vset.pattern.permute.xlu0 0
          %606 = vperm.xlu0 %605, %v366
          %v607 = vpop.permute.xlu0 %606
          %610 = vset.pattern.permute.xlu0 0
          %611 = vperm.xlu0 %610, %v367
          %v612 = vpop.permute.xlu0 %611
          %615 = vset.pattern.permute.xlu0 0
          %616 = vperm.xlu0 %615, %v368
          %v617 = vpop.permute.xlu0 %616
          %620 = vset.pattern.permute.xlu0 0
          %621 = vperm.xlu0 %620, %v369
          %v622 = vpop.permute.xlu0 %621
          %625 = vset.pattern.permute.xlu0 0
          %626 = vperm.xlu0 %625, %v370
          %v627 = vpop.permute.xlu0 %626
          %630 = vset.pattern.permute.xlu0 0
          %631 = vperm.xlu0 %630, %v371
          %v632 = vpop.permute.xlu0 %631
          %635 = vset.pattern.permute.xlu0 0
          %636 = vperm.xlu0 %635, %v372
          %v637 = vpop.permute.xlu0 %636
          %640 = vset.pattern.permute.xlu0 0
          %641 = vperm.xlu0 %640, %v373
          %v642 = vpop.permute.xlu0 %641
          %645 = vset.pattern.permute.xlu0 0
          %646 = vperm.xlu0 %645, %v374
          %v647 = vpop.permute.xlu0 %646
          %650 = vset.pattern.permute.xlu0 0
          %651 = vperm.xlu0 %650, %v375
          %v652 = vpop.permute.xlu0 %651
          %655 = vset.pattern.permute.xlu0 0
          %656 = vperm.xlu0 %655, %v376
          %v657 = vpop.permute.xlu0 %656
          %660 = vset.pattern.permute.xlu0 0
          %661 = vperm.xlu0 %660, %v377
          %v662 = vpop.permute.xlu0 %661
          %665 = vset.pattern.permute.xlu0 0
          %666 = vperm.xlu0 %665, %v378
          %v667 = vpop.permute.xlu0 %666
          %670 = vset.pattern.permute.xlu0 0
          %671 = vperm.xlu0 %670, %v379
          %v672 = vpop.permute.xlu0 %671
          %675 = vset.pattern.permute.xlu0 0
          %676 = vperm.xlu0 %675, %v380
          %v677 = vpop.permute.xlu0 %676
          %680 = vset.pattern.permute.xlu0 0
          %681 = vperm.xlu0 %680, %v381
          %v682 = vpop.permute.xlu0 %681
          %685 = vset.pattern.permute.xlu0 0
          %686 = vperm.xlu0 %685, %v382
          %v687 = vpop.permute.xlu0 %686
          %690 = vset.pattern.permute.xlu0 0
          %691 = vperm.xlu0 %690, %v383
          %v692 = vpop.permute.xlu0 %691
          %695 = vset.pattern.permute.xlu0 0
          %696 = vperm.xlu0 %695, %v384
          %v697 = vpop.permute.xlu0 %696
          %700 = vset.pattern.permute.xlu0 0
          %701 = vperm.xlu0 %700, %v385
          %v702 = vpop.permute.xlu0 %701
          %705 = vset.pattern.permute.xlu0 0
          %706 = vperm.xlu0 %705, %v386
          %v707 = vpop.permute.xlu0 %706
          %v710 = vperm.slane %v387, 0
          %v712 = vmul.f32 %v392, %v710
          %v713 = vmul.f32 %v397, %v710
          %v714 = vmul.f32 %v402, %v710
          %v715 = vmul.f32 %v407, %v710
          %v716 = vmul.f32 %v412, %v710
          %v717 = vmul.f32 %v417, %v710
          %v718 = vmul.f32 %v422, %v710
          %v719 = vmul.f32 %v427, %v710
          %v720 = vmul.f32 %v432, %v710
          %v721 = vmul.f32 %v437, %v710
          %v722 = vmul.f32 %v442, %v710
          %v723 = vmul.f32 %v447, %v710
          %v724 = vmul.f32 %v452, %v710
          %v725 = vmul.f32 %v457, %v710
          %v726 = vmul.f32 %v462, %v710
          %v727 = vmul.f32 %v467, %v710
          %v728 = vmul.f32 %v472, %v710
          %v729 = vmul.f32 %v477, %v710
          %v730 = vmul.f32 %v482, %v710
          %v731 = vmul.f32 %v487, %v710
          %v732 = vmul.f32 %v492, %v710
          %v733 = vmul.f32 %v497, %v710
          %v734 = vmul.f32 %v502, %v710
          %v735 = vmul.f32 %v507, %v710
          %v736 = vmul.f32 %v512, %v710
          %v737 = vmul.f32 %v517, %v710
          %v738 = vmul.f32 %v522, %v710
          %v739 = vmul.f32 %v527, %v710
          %v740 = vmul.f32 %v532, %v710
          %v741 = vmul.f32 %v537, %v710
          %v742 = vmul.f32 %v542, %v710
          %v743 = vmul.f32 %v547, %v710
          %v744 = vmul.f32 %v552, %v710
          %v745 = vmul.f32 %v557, %v710
          %v746 = vmul.f32 %v562, %v710
          %v747 = vmul.f32 %v567, %v710
          %v748 = vmul.f32 %v572, %v710
          %v749 = vmul.f32 %v577, %v710
          %v750 = vmul.f32 %v582, %v710
          %v751 = vmul.f32 %v587, %v710
          %v752 = vmul.f32 %v592, %v710
          %v753 = vmul.f32 %v597, %v710
          %v754 = vmul.f32 %v602, %v710
          %v755 = vmul.f32 %v607, %v710
          %v756 = vmul.f32 %v612, %v710
          %v757 = vmul.f32 %v617, %v710
          %v758 = vmul.f32 %v622, %v710
          %v759 = vmul.f32 %v627, %v710
          %v760 = vmul.f32 %v632, %v710
          %v761 = vmul.f32 %v637, %v710
          %v762 = vmul.f32 %v642, %v710
          %v763 = vmul.f32 %v647, %v710
          %v764 = vmul.f32 %v652, %v710
          %v765 = vmul.f32 %v657, %v710
          %v766 = vmul.f32 %v662, %v710
          %v767 = vmul.f32 %v667, %v710
          %v768 = vmul.f32 %v672, %v710
          %v769 = vmul.f32 %v677, %v710
          %v770 = vmul.f32 %v682, %v710
          %v771 = vmul.f32 %v687, %v710
          %v772 = vmul.f32 %v692, %v710
          %v773 = vmul.f32 %v697, %v710
          %v774 = vmul.f32 %v702, %v710
          %v775 = vmul.f32 %v707, %v710
          %v777 = vperm.slane %v388, 0
          %v779 = vadd.f32 %v712, %v777
          %v780 = vadd.f32 %v713, %v777
          %v781 = vadd.f32 %v714, %v777
          %v782 = vadd.f32 %v715, %v777
          %v783 = vadd.f32 %v716, %v777
          %v784 = vadd.f32 %v717, %v777
          %v785 = vadd.f32 %v718, %v777
          %v786 = vadd.f32 %v719, %v777
          %v787 = vadd.f32 %v720, %v777
          %v788 = vadd.f32 %v721, %v777
          %v789 = vadd.f32 %v722, %v777
          %v790 = vadd.f32 %v723, %v777
          %v791 = vadd.f32 %v724, %v777
          %v792 = vadd.f32 %v725, %v777
          %v793 = vadd.f32 %v726, %v777
          %v794 = vadd.f32 %v727, %v777
          %v795 = vadd.f32 %v728, %v777
          %v796 = vadd.f32 %v729, %v777
          %v797 = vadd.f32 %v730, %v777
          %v798 = vadd.f32 %v731, %v777
          %v799 = vadd.f32 %v732, %v777
          %v800 = vadd.f32 %v733, %v777
          %v801 = vadd.f32 %v734, %v777
          %v802 = vadd.f32 %v735, %v777
          %v803 = vadd.f32 %v736, %v777
          %v804 = vadd.f32 %v737, %v777
          %v805 = vadd.f32 %v738, %v777
          %v806 = vadd.f32 %v739, %v777
          %v807 = vadd.f32 %v740, %v777
          %v808 = vadd.f32 %v741, %v777
          %v809 = vadd.f32 %v742, %v777
          %v810 = vadd.f32 %v743, %v777
          %v811 = vadd.f32 %v744, %v777
          %v812 = vadd.f32 %v745, %v777
          %v813 = vadd.f32 %v746, %v777
          %v814 = vadd.f32 %v747, %v777
          %v815 = vadd.f32 %v748, %v777
          %v816 = vadd.f32 %v749, %v777
          %v817 = vadd.f32 %v750, %v777
          %v818 = vadd.f32 %v751, %v777
          %v819 = vadd.f32 %v752, %v777
          %v820 = vadd.f32 %v753, %v777
          %v821 = vadd.f32 %v754, %v777
          %v822 = vadd.f32 %v755, %v777
          %v823 = vadd.f32 %v756, %v777
          %v824 = vadd.f32 %v757, %v777
          %v825 = vadd.f32 %v758, %v777
          %v826 = vadd.f32 %v759, %v777
          %v827 = vadd.f32 %v760, %v777
          %v828 = vadd.f32 %v761, %v777
          %v829 = vadd.f32 %v762, %v777
          %v830 = vadd.f32 %v763, %v777
          %v831 = vadd.f32 %v764, %v777
          %v832 = vadd.f32 %v765, %v777
          %v833 = vadd.f32 %v766, %v777
          %v834 = vadd.f32 %v767, %v777
          %v835 = vadd.f32 %v768, %v777
          %v836 = vadd.f32 %v769, %v777
          %v837 = vadd.f32 %v770, %v777
          %v838 = vadd.f32 %v771, %v777
          %v839 = vadd.f32 %v772, %v777
          %v840 = vadd.f32 %v773, %v777
          %v841 = vadd.f32 %v774, %v777
          %v842 = vadd.f32 %v775, %v777
          %v843 = vtanh.pop %v779
          %v844 = vtanh.pop %v780
          %v845 = vtanh.pop %v781
          %v846 = vtanh.pop %v782
          %v847 = vtanh.pop %v783
          %v848 = vtanh.pop %v784
          %v849 = vtanh.pop %v785
          %v850 = vtanh.pop %v786
          %v851 = vtanh.pop %v787
          %v852 = vtanh.pop %v788
          %v853 = vtanh.pop %v789
          %v854 = vtanh.pop %v790
          %v855 = vtanh.pop %v791
          %v856 = vtanh.pop %v792
          %v857 = vtanh.pop %v793
          %v858 = vtanh.pop %v794
          %v859 = vtanh.pop %v795
          %v860 = vtanh.pop %v796
          %v861 = vtanh.pop %v797
          %v862 = vtanh.pop %v798
          %v863 = vtanh.pop %v799
          %v864 = vtanh.pop %v800
          %v865 = vtanh.pop %v801
          %v866 = vtanh.pop %v802
          %v867 = vtanh.pop %v803
          %v868 = vtanh.pop %v804
          %v869 = vtanh.pop %v805
          %v870 = vtanh.pop %v806
          %v871 = vtanh.pop %v807
          %v872 = vtanh.pop %v808
          %v873 = vtanh.pop %v809
          %v874 = vtanh.pop %v810
          %v875 = vtanh.pop %v811
          %v876 = vtanh.pop %v812
          %v877 = vtanh.pop %v813
          %v878 = vtanh.pop %v814
          %v879 = vtanh.pop %v815
          %v880 = vtanh.pop %v816
          %v881 = vtanh.pop %v817
          %v882 = vtanh.pop %v818
          %v883 = vtanh.pop %v819
          %v884 = vtanh.pop %v820
          %v885 = vtanh.pop %v821
          %v886 = vtanh.pop %v822
          %v887 = vtanh.pop %v823
          %v888 = vtanh.pop %v824
          %v889 = vtanh.pop %v825
          %v890 = vtanh.pop %v826
          %v891 = vtanh.pop %v827
          %v892 = vtanh.pop %v828
          %v893 = vtanh.pop %v829
          %v894 = vtanh.pop %v830
          %v895 = vtanh.pop %v831
          %v896 = vtanh.pop %v832
          %v897 = vtanh.pop %v833
          %v898 = vtanh.pop %v834
          %v899 = vtanh.pop %v835
          %v900 = vtanh.pop %v836
          %v901 = vtanh.pop %v837
          %v902 = vtanh.pop %v838
          %v903 = vtanh.pop %v839
          %v904 = vtanh.pop %v840
          %v905 = vtanh.pop %v841
          %v906 = vtanh.pop %v842
          %907 = vst [vmem:[#allocation2] sm:$0xff] %v843
          %908 = vst [vmem:[#allocation2 + $0x8] sm:$0xff] %v844
          %909 = vst [vmem:[#allocation2 + $0x10] sm:$0xff] %v845
          %910 = vst [vmem:[#allocation2 + $0x18] sm:$0xff] %v846
          %911 = vst [vmem:[#allocation2 + $0x20] sm:$0xff] %v847
          %912 = vst [vmem:[#allocation2 + $0x28] sm:$0xff] %v848
          %913 = vst [vmem:[#allocation2 + $0x30] sm:$0xff] %v849
          %914 = vst [vmem:[#allocation2 + $0x38] sm:$0xff] %v850
          %915 = vst [vmem:[#allocation2 + $0x40] sm:$0xff] %v851
          %916 = vst [vmem:[#allocation2 + $0x48] sm:$0xff] %v852
          %917 = vst [vmem:[#allocation2 + $0x50] sm:$0xff] %v853
          %918 = vst [vmem:[#allocation2 + $0x58] sm:$0xff] %v854
          %919 = vst [vmem:[#allocation2 + $0x60] sm:$0xff] %v855
          %920 = vst [vmem:[#allocation2 + $0x68] sm:$0xff] %v856
          %921 = vst [vmem:[#allocation2 + $0x70] sm:$0xff] %v857
          %922 = vst [vmem:[#allocation2 + $0x78] sm:$0xff] %v858
          %923 = vst [vmem:[#allocation2 + $0x80] sm:$0xff] %v859
          %924 = vst [vmem:[#allocation2 + $0x88] sm:$0xff] %v860
          %925 = vst [vmem:[#allocation2 + $0x90] sm:$0xff] %v861
          %926 = vst [vmem:[#allocation2 + $0x98] sm:$0xff] %v862
          %927 = vst [vmem:[#allocation2 + $0xa0] sm:$0xff] %v863
          %928 = vst [vmem:[#allocation2 + $0xa8] sm:$0xff] %v864
          %929 = vst [vmem:[#allocation2 + $0xb0] sm:$0xff] %v865
          %930 = vst [vmem:[#allocation2 + $0xb8] sm:$0xff] %v866
          %931 = vst [vmem:[#allocation2 + $0xc0] sm:$0xff] %v867
          %932 = vst [vmem:[#allocation2 + $0xc8] sm:$0xff] %v868
          %933 = vst [vmem:[#allocation2 + $0xd0] sm:$0xff] %v869
          %934 = vst [vmem:[#allocation2 + $0xd8] sm:$0xff] %v870
          %935 = vst [vmem:[#allocation2 + $0xe0] sm:$0xff] %v871
          %936 = vst [vmem:[#allocation2 + $0xe8] sm:$0xff] %v872
          %937 = vst [vmem:[#allocation2 + $0xf0] sm:$0xff] %v873
          %938 = vst [vmem:[#allocation2 + $0xf8] sm:$0xff] %v874
          %939 = vst [vmem:[#allocation2 + $0x100] sm:$0xff] %v875
          %940 = vst [vmem:[#allocation2 + $0x108] sm:$0xff] %v876
          %941 = vst [vmem:[#allocation2 + $0x110] sm:$0xff] %v877
          %942 = vst [vmem:[#allocation2 + $0x118] sm:$0xff] %v878
          %943 = vst [vmem:[#allocation2 + $0x120] sm:$0xff] %v879
          %944 = vst [vmem:[#allocation2 + $0x128] sm:$0xff] %v880
          %945 = vst [vmem:[#allocation2 + $0x130] sm:$0xff] %v881
          %946 = vst [vmem:[#allocation2 + $0x138] sm:$0xff] %v882
          %947 = vst [vmem:[#allocation2 + $0x140] sm:$0xff] %v883
          %948 = vst [vmem:[#allocation2 + $0x148] sm:$0xff] %v884
          %949 = vst [vmem:[#allocation2 + $0x150] sm:$0xff] %v885
          %950 = vst [vmem:[#allocation2 + $0x158] sm:$0xff] %v886
          %951 = vst [vmem:[#allocation2 + $0x160] sm:$0xff] %v887
          %952 = vst [vmem:[#allocation2 + $0x168] sm:$0xff] %v888
          %953 = vst [vmem:[#allocation2 + $0x170] sm:$0xff] %v889
          %954 = vst [vmem:[#allocation2 + $0x178] sm:$0xff] %v890
          %955 = vst [vmem:[#allocation2 + $0x180] sm:$0xff] %v891
          %956 = vst [vmem:[#allocation2 + $0x188] sm:$0xff] %v892
          %957 = vst [vmem:[#allocation2 + $0x190] sm:$0xff] %v893
          %958 = vst [vmem:[#allocation2 + $0x198] sm:$0xff] %v894
          %959 = vst [vmem:[#allocation2 + $0x1a0] sm:$0xff] %v895
          %960 = vst [vmem:[#allocation2 + $0x1a8] sm:$0xff] %v896
          %961 = vst [vmem:[#allocation2 + $0x1b0] sm:$0xff] %v897
          %962 = vst [vmem:[#allocation2 + $0x1b8] sm:$0xff] %v898
          %963 = vst [vmem:[#allocation2 + $0x1c0] sm:$0xff] %v899
          %964 = vst [vmem:[#allocation2 + $0x1c8] sm:$0xff] %v900
          %965 = vst [vmem:[#allocation2 + $0x1d0] sm:$0xff] %v901
          %966 = vst [vmem:[#allocation2 + $0x1d8] sm:$0xff] %v902
          %967 = vst [vmem:[#allocation2 + $0x1e0] sm:$0xff] %v903
          %968 = vst [vmem:[#allocation2 + $0x1e8] sm:$0xff] %v904
          %969 = vst [vmem:[#allocation2 + $0x1f0] sm:$0xff] %v905
          %970 = vst [vmem:[#allocation2 + $0x1f8] sm:$0xff] %v906
        $region52: #{tpu_custom_call.1} parent=47 // pred_fallthru
          _
        %v971 = vld [vmem:[%s314] sm:$0xff]
        %v972 = vld [vmem:[%s314 + $0x8] sm:$0xff]
        %v973 = vld [vmem:[%s314 + $0x10] sm:$0xff]
        %v974 = vld [vmem:[%s314 + $0x18] sm:$0xff]
        %v975 = vld [vmem:[%s314 + $0x20] sm:$0xff]
        %v976 = vld [vmem:[%s314 + $0x28] sm:$0xff]
        %v977 = vld [vmem:[%s314 + $0x30] sm:$0xff]
        %v978 = vld [vmem:[%s314 + $0x38] sm:$0xff]
        %v979 = vld [vmem:[%s314 + $0x40] sm:$0xff]
        %v980 = vld [vmem:[%s314 + $0x48] sm:$0xff]
        %v981 = vld [vmem:[%s314 + $0x50] sm:$0xff]
        %v982 = vld [vmem:[%s314 + $0x58] sm:$0xff]
        %v983 = vld [vmem:[%s314 + $0x60] sm:$0xff]
        %v984 = vld [vmem:[%s314 + $0x68] sm:$0xff]
        %v985 = vld [vmem:[%s314 + $0x70] sm:$0xff]
        %v986 = vld [vmem:[%s314 + $0x78] sm:$0xff]
        %v987 = vld [vmem:[%s317] sm:$0x1]
        %v988 = vld [vmem:[#allocation2] sm:$0xff]
        %v989 = vld [vmem:[#allocation2 + $0x8] sm:$0xff]
        %v990 = vld [vmem:[#allocation2 + $0x10] sm:$0xff]
        %v991 = vld [vmem:[#allocation2 + $0x18] sm:$0xff]
        %v992 = vld [vmem:[#allocation2 + $0x20] sm:$0xff]
        %v993 = vld [vmem:[#allocation2 + $0x28] sm:$0xff]
        %v994 = vld [vmem:[#allocation2 + $0x30] sm:$0xff]
        %v995 = vld [vmem:[#allocation2 + $0x38] sm:$0xff]
        %v996 = vld [vmem:[#allocation2 + $0x40] sm:$0xff]
        %v997 = vld [vmem:[#allocation2 + $0x48] sm:$0xff]
        %v998 = vld [vmem:[#allocation2 + $0x50] sm:$0xff]
        %v999 = vld [vmem:[#allocation2 + $0x58] sm:$0xff]
        %v1000 = vld [vmem:[#allocation2 + $0x60] sm:$0xff]
        %v1001 = vld [vmem:[#allocation2 + $0x68] sm:$0xff]
        %v1002 = vld [vmem:[#allocation2 + $0x70] sm:$0xff]
        %v1003 = vld [vmem:[#allocation2 + $0x78] sm:$0xff]
        %v1004 = vld [vmem:[#allocation2 + $0x80] sm:$0xff]
        %v1005 = vld [vmem:[#allocation2 + $0x88] sm:$0xff]
        %v1006 = vld [vmem:[#allocation2 + $0x90] sm:$0xff]
        %v1007 = vld [vmem:[#allocation2 + $0x98] sm:$0xff]
        %v1008 = vld [vmem:[#allocation2 + $0xa0] sm:$0xff]
        %v1009 = vld [vmem:[#allocation2 + $0xa8] sm:$0xff]
        %v1010 = vld [vmem:[#allocation2 + $0xb0] sm:$0xff]
        %v1011 = vld [vmem:[#allocation2 + $0xb8] sm:$0xff]
        %v1012 = vld [vmem:[#allocation2 + $0xc0] sm:$0xff]
        %v1013 = vld [vmem:[#allocation2 + $0xc8] sm:$0xff]
        %v1014 = vld [vmem:[#allocation2 + $0xd0] sm:$0xff]
        %v1015 = vld [vmem:[#allocation2 + $0xd8] sm:$0xff]
        %v1016 = vld [vmem:[#allocation2 + $0xe0] sm:$0xff]
        %v1017 = vld [vmem:[#allocation2 + $0xe8] sm:$0xff]
        %v1018 = vld [vmem:[#allocation2 + $0xf0] sm:$0xff]
        %v1019 = vld [vmem:[#allocation2 + $0xf8] sm:$0xff]
        %v1020 = vld [vmem:[#allocation2 + $0x100] sm:$0xff]
        %v1021 = vld [vmem:[#allocation2 + $0x108] sm:$0xff]
        %v1022 = vld [vmem:[#allocation2 + $0x110] sm:$0xff]
        %v1023 = vld [vmem:[#allocation2 + $0x118] sm:$0xff]
        %v1024 = vld [vmem:[#allocation2 + $0x120] sm:$0xff]
        %v1025 = vld [vmem:[#allocation2 + $0x128] sm:$0xff]
        %v1026 = vld [vmem:[#allocation2 + $0x130] sm:$0xff]
        %v1027 = vld [vmem:[#allocation2 + $0x138] sm:$0xff]
        %v1028 = vld [vmem:[#allocation2 + $0x140] sm:$0xff]
        %v1029 = vld [vmem:[#allocation2 + $0x148] sm:$0xff]
        %v1030 = vld [vmem:[#allocation2 + $0x150] sm:$0xff]
        %v1031 = vld [vmem:[#allocation2 + $0x158] sm:$0xff]
        %v1032 = vld [vmem:[#allocation2 + $0x160] sm:$0xff]
        %v1033 = vld [vmem:[#allocation2 + $0x168] sm:$0xff]
        %v1034 = vld [vmem:[#allocation2 + $0x170] sm:$0xff]
        %v1035 = vld [vmem:[#allocation2 + $0x178] sm:$0xff]
        %v1036 = vld [vmem:[#allocation2 + $0x180] sm:$0xff]
        %v1037 = vld [vmem:[#allocation2 + $0x188] sm:$0xff]
        %v1038 = vld [vmem:[#allocation2 + $0x190] sm:$0xff]
        %v1039 = vld [vmem:[#allocation2 + $0x198] sm:$0xff]
        %v1040 = vld [vmem:[#allocation2 + $0x1a0] sm:$0xff]
        %v1041 = vld [vmem:[#allocation2 + $0x1a8] sm:$0xff]
        %v1042 = vld [vmem:[#allocation2 + $0x1b0] sm:$0xff]
        %v1043 = vld [vmem:[#allocation2 + $0x1b8] sm:$0xff]
        %v1044 = vld [vmem:[#allocation2 + $0x1c0] sm:$0xff]
        %v1045 = vld [vmem:[#allocation2 + $0x1c8] sm:$0xff]
        %v1046 = vld [vmem:[#allocation2 + $0x1d0] sm:$0xff]
        %v1047 = vld [vmem:[#allocation2 + $0x1d8] sm:$0xff]
        %v1048 = vld [vmem:[#allocation2 + $0x1e0] sm:$0xff]
        %v1049 = vld [vmem:[#allocation2 + $0x1e8] sm:$0xff]
        %v1050 = vld [vmem:[#allocation2 + $0x1f0] sm:$0xff]
        %v1051 = vld [vmem:[#allocation2 + $0x1f8] sm:$0xff]
        %v1053 = vperm.slane %v987, 0
        %1055 = vmatpush.msra.mxu0 %v986
        %1056 = vmatpush.msra.mxu0 %v985
        %1057 = vmatpush.msra.mxu0 %v984
        %1058 = vmatpush.msra.mxu0 %v983
        %1059 = vmatpush.msra.mxu0 %v982
        %1060 = vmatpush.msra.mxu0 %v981
        %1061 = vmatpush.msra.mxu0 %v980
        %1062 = vmatpush.msra.mxu0 %v979
        %1063 = vmatpush.msra.mxu0 %v978
        %1064 = vmatpush.msra.mxu0 %v977
        %1065 = vmatpush.msra.mxu0 %v976
        %1066 = vmatpush.msra.mxu0 %v975
        %1067 = vmatpush.msra.mxu0 %v974
        %1068 = vmatpush.msra.mxu0 %v973
        %1069 = vmatpush.msra.mxu0 %v972
        %1070 = vmatpush.msra.mxu0 %v971
        %1071 = vmatmul.f32.gmra.mxu0 %v988
        %v1072 = vpop.f32.mrf.mxu0
        %v1073 = vadd.f32 %v1053, %v1072
        %1074 = vmatmul.f32.gmra.mxu0 %v989
        %v1075 = vpop.f32.mrf.mxu0
        %v1076 = vadd.f32 %v1053, %v1075
        %1077 = vmatmul.f32.gmra.mxu0 %v990
        %v1078 = vpop.f32.mrf.mxu0
        %v1079 = vadd.f32 %v1053, %v1078
        %1080 = vmatmul.f32.gmra.mxu0 %v991
        %v1081 = vpop.f32.mrf.mxu0
        %v1082 = vadd.f32 %v1053, %v1081
        %1083 = vmatmul.f32.gmra.mxu0 %v992
        %v1084 = vpop.f32.mrf.mxu0
        %v1085 = vadd.f32 %v1053, %v1084
        %1086 = vmatmul.f32.gmra.mxu0 %v993
        %v1087 = vpop.f32.mrf.mxu0
        %v1088 = vadd.f32 %v1053, %v1087
        %1089 = vmatmul.f32.gmra.mxu0 %v994
        %v1090 = vpop.f32.mrf.mxu0
        %v1091 = vadd.f32 %v1053, %v1090
        %1092 = vmatmul.f32.gmra.mxu0 %v995
        %v1093 = vpop.f32.mrf.mxu0
        %v1094 = vadd.f32 %v1053, %v1093
        %1095 = vmatmul.f32.gmra.mxu0 %v996
        %v1096 = vpop.f32.mrf.mxu0
        %v1097 = vadd.f32 %v1053, %v1096
        %1098 = vmatmul.f32.gmra.mxu0 %v997
        %v1099 = vpop.f32.mrf.mxu0
        %v1100 = vadd.f32 %v1053, %v1099
        %1101 = vmatmul.f32.gmra.mxu0 %v998
        %v1102 = vpop.f32.mrf.mxu0
        %v1103 = vadd.f32 %v1053, %v1102
        %1104 = vmatmul.f32.gmra.mxu0 %v999
        %v1105 = vpop.f32.mrf.mxu0
        %v1106 = vadd.f32 %v1053, %v1105
        %1107 = vmatmul.f32.gmra.mxu0 %v1000
        %v1108 = vpop.f32.mrf.mxu0
        %v1109 = vadd.f32 %v1053, %v1108
        %1110 = vmatmul.f32.gmra.mxu0 %v1001
        %v1111 = vpop.f32.mrf.mxu0
        %v1112 = vadd.f32 %v1053, %v1111
        %1113 = vmatmul.f32.gmra.mxu0 %v1002
        %v1114 = vpop.f32.mrf.mxu0
        %v1115 = vadd.f32 %v1053, %v1114
        %1116 = vmatmul.f32.gmra.mxu0 %v1003
        %v1117 = vpop.f32.mrf.mxu0
        %v1118 = vadd.f32 %v1053, %v1117
        %1119 = vmatmul.f32.gmra.mxu0 %v1004
        %v1120 = vpop.f32.mrf.mxu0
        %v1121 = vadd.f32 %v1053, %v1120
        %1122 = vmatmul.f32.gmra.mxu0 %v1005
        %v1123 = vpop.f32.mrf.mxu0
        %v1124 = vadd.f32 %v1053, %v1123
        %1125 = vmatmul.f32.gmra.mxu0 %v1006
        %v1126 = vpop.f32.mrf.mxu0
        %v1127 = vadd.f32 %v1053, %v1126
        %1128 = vmatmul.f32.gmra.mxu0 %v1007
        %v1129 = vpop.f32.mrf.mxu0
        %v1130 = vadd.f32 %v1053, %v1129
        %1131 = vmatmul.f32.gmra.mxu0 %v1008
        %v1132 = vpop.f32.mrf.mxu0
        %v1133 = vadd.f32 %v1053, %v1132
        %1134 = vmatmul.f32.gmra.mxu0 %v1009
        %v1135 = vpop.f32.mrf.mxu0
        %v1136 = vadd.f32 %v1053, %v1135
        %1137 = vmatmul.f32.gmra.mxu0 %v1010
        %v1138 = vpop.f32.mrf.mxu0
        %v1139 = vadd.f32 %v1053, %v1138
        %1140 = vmatmul.f32.gmra.mxu0 %v1011
        %v1141 = vpop.f32.mrf.mxu0
        %v1142 = vadd.f32 %v1053, %v1141
        %1143 = vmatmul.f32.gmra.mxu0 %v1012
        %v1144 = vpop.f32.mrf.mxu0
        %v1145 = vadd.f32 %v1053, %v1144
        %1146 = vmatmul.f32.gmra.mxu0 %v1013
        %v1147 = vpop.f32.mrf.mxu0
        %v1148 = vadd.f32 %v1053, %v1147
        %1149 = vmatmul.f32.gmra.mxu0 %v1014
        %v1150 = vpop.f32.mrf.mxu0
        %v1151 = vadd.f32 %v1053, %v1150
        %1152 = vmatmul.f32.gmra.mxu0 %v1015
        %v1153 = vpop.f32.mrf.mxu0
        %v1154 = vadd.f32 %v1053, %v1153
        %1155 = vmatmul.f32.gmra.mxu0 %v1016
        %v1156 = vpop.f32.mrf.mxu0
        %v1157 = vadd.f32 %v1053, %v1156
        %1158 = vmatmul.f32.gmra.mxu0 %v1017
        %v1159 = vpop.f32.mrf.mxu0
        %v1160 = vadd.f32 %v1053, %v1159
        %1161 = vmatmul.f32.gmra.mxu0 %v1018
        %v1162 = vpop.f32.mrf.mxu0
        %v1163 = vadd.f32 %v1053, %v1162
        %1164 = vmatmul.f32.gmra.mxu0 %v1019
        %v1165 = vpop.f32.mrf.mxu0
        %v1166 = vadd.f32 %v1053, %v1165
        %1167 = vmatmul.f32.gmra.mxu0 %v1020
        %v1168 = vpop.f32.mrf.mxu0
        %v1169 = vadd.f32 %v1053, %v1168
        %1170 = vmatmul.f32.gmra.mxu0 %v1021
        %v1171 = vpop.f32.mrf.mxu0
        %v1172 = vadd.f32 %v1053, %v1171
        %1173 = vmatmul.f32.gmra.mxu0 %v1022
        %v1174 = vpop.f32.mrf.mxu0
        %v1175 = vadd.f32 %v1053, %v1174
        %1176 = vmatmul.f32.gmra.mxu0 %v1023
        %v1177 = vpop.f32.mrf.mxu0
        %v1178 = vadd.f32 %v1053, %v1177
        %1179 = vmatmul.f32.gmra.mxu0 %v1024
        %v1180 = vpop.f32.mrf.mxu0
        %v1181 = vadd.f32 %v1053, %v1180
        %1182 = vmatmul.f32.gmra.mxu0 %v1025
        %v1183 = vpop.f32.mrf.mxu0
        %v1184 = vadd.f32 %v1053, %v1183
        %1185 = vmatmul.f32.gmra.mxu0 %v1026
        %v1186 = vpop.f32.mrf.mxu0
        %v1187 = vadd.f32 %v1053, %v1186
        %1188 = vmatmul.f32.gmra.mxu0 %v1027
        %v1189 = vpop.f32.mrf.mxu0
        %v1190 = vadd.f32 %v1053, %v1189
        %1191 = vmatmul.f32.gmra.mxu0 %v1028
        %v1192 = vpop.f32.mrf.mxu0
        %v1193 = vadd.f32 %v1053, %v1192
        %1194 = vmatmul.f32.gmra.mxu0 %v1029
        %v1195 = vpop.f32.mrf.mxu0
        %v1196 = vadd.f32 %v1053, %v1195
        %1197 = vmatmul.f32.gmra.mxu0 %v1030
        %v1198 = vpop.f32.mrf.mxu0
        %v1199 = vadd.f32 %v1053, %v1198
        %1200 = vmatmul.f32.gmra.mxu0 %v1031
        %v1201 = vpop.f32.mrf.mxu0
        %v1202 = vadd.f32 %v1053, %v1201
        %1203 = vmatmul.f32.gmra.mxu0 %v1032
        %v1204 = vpop.f32.mrf.mxu0
        %v1205 = vadd.f32 %v1053, %v1204
        %1206 = vmatmul.f32.gmra.mxu0 %v1033
        %v1207 = vpop.f32.mrf.mxu0
        %v1208 = vadd.f32 %v1053, %v1207
        %1209 = vmatmul.f32.gmra.mxu0 %v1034
        %v1210 = vpop.f32.mrf.mxu0
        %v1211 = vadd.f32 %v1053, %v1210
        %1212 = vmatmul.f32.gmra.mxu0 %v1035
        %v1213 = vpop.f32.mrf.mxu0
        %v1214 = vadd.f32 %v1053, %v1213
        %1215 = vmatmul.f32.gmra.mxu0 %v1036
        %v1216 = vpop.f32.mrf.mxu0
        %v1217 = vadd.f32 %v1053, %v1216
        %1218 = vmatmul.f32.gmra.mxu0 %v1037
        %v1219 = vpop.f32.mrf.mxu0
        %v1220 = vadd.f32 %v1053, %v1219
        %1221 = vmatmul.f32.gmra.mxu0 %v1038
        %v1222 = vpop.f32.mrf.mxu0
        %v1223 = vadd.f32 %v1053, %v1222
        %1224 = vmatmul.f32.gmra.mxu0 %v1039
        %v1225 = vpop.f32.mrf.mxu0
        %v1226 = vadd.f32 %v1053, %v1225
        %1227 = vmatmul.f32.gmra.mxu0 %v1040
        %v1228 = vpop.f32.mrf.mxu0
        %v1229 = vadd.f32 %v1053, %v1228
        %1230 = vmatmul.f32.gmra.mxu0 %v1041
        %v1231 = vpop.f32.mrf.mxu0
        %v1232 = vadd.f32 %v1053, %v1231
        %1233 = vmatmul.f32.gmra.mxu0 %v1042
        %v1234 = vpop.f32.mrf.mxu0
        %v1235 = vadd.f32 %v1053, %v1234
        %1236 = vmatmul.f32.gmra.mxu0 %v1043
        %v1237 = vpop.f32.mrf.mxu0
        %v1238 = vadd.f32 %v1053, %v1237
        %1239 = vmatmul.f32.gmra.mxu0 %v1044
        %v1240 = vpop.f32.mrf.mxu0
        %v1241 = vadd.f32 %v1053, %v1240
        %1242 = vmatmul.f32.gmra.mxu0 %v1045
        %v1243 = vpop.f32.mrf.mxu0
        %v1244 = vadd.f32 %v1053, %v1243
        %1245 = vmatmul.f32.gmra.mxu0 %v1046
        %v1246 = vpop.f32.mrf.mxu0
        %v1247 = vadd.f32 %v1053, %v1246
        %1248 = vmatmul.f32.gmra.mxu0 %v1047
        %v1249 = vpop.f32.mrf.mxu0
        %v1250 = vadd.f32 %v1053, %v1249
        %1251 = vmatmul.f32.gmra.mxu0 %v1048
        %v1252 = vpop.f32.mrf.mxu0
        %v1253 = vadd.f32 %v1053, %v1252
        %1254 = vmatmul.f32.gmra.mxu0 %v1049
        %v1255 = vpop.f32.mrf.mxu0
        %v1256 = vadd.f32 %v1053, %v1255
        %1257 = vmatmul.f32.gmra.mxu0 %v1050
        %v1258 = vpop.f32.mrf.mxu0
        %v1259 = vadd.f32 %v1053, %v1258
        %1260 = vmatmul.f32.gmra.mxu0 %v1051
        %v1261 = vpop.f32.mrf.mxu0
        %v1262 = vadd.f32 %v1053, %v1261
        %1263 = vdwg.mxu0
        %v1264 = vtanh.pop %v1073
        %v1265 = vtanh.pop %v1076
        %v1266 = vtanh.pop %v1079
        %v1267 = vtanh.pop %v1082
        %v1268 = vtanh.pop %v1085
        %v1269 = vtanh.pop %v1088
        %v1270 = vtanh.pop %v1091
        %v1271 = vtanh.pop %v1094
        %v1272 = vtanh.pop %v1097
        %v1273 = vtanh.pop %v1100
        %v1274 = vtanh.pop %v1103
        %v1275 = vtanh.pop %v1106
        %v1276 = vtanh.pop %v1109
        %v1277 = vtanh.pop %v1112
        %v1278 = vtanh.pop %v1115
        %v1279 = vtanh.pop %v1118
        %v1280 = vtanh.pop %v1121
        %v1281 = vtanh.pop %v1124
        %v1282 = vtanh.pop %v1127
        %v1283 = vtanh.pop %v1130
        %v1284 = vtanh.pop %v1133
        %v1285 = vtanh.pop %v1136
        %v1286 = vtanh.pop %v1139
        %v1287 = vtanh.pop %v1142
        %v1288 = vtanh.pop %v1145
        %v1289 = vtanh.pop %v1148
        %v1290 = vtanh.pop %v1151
        %v1291 = vtanh.pop %v1154
        %v1292 = vtanh.pop %v1157
        %v1293 = vtanh.pop %v1160
        %v1294 = vtanh.pop %v1163
        %v1295 = vtanh.pop %v1166
        %v1296 = vtanh.pop %v1169
        %v1297 = vtanh.pop %v1172
        %v1298 = vtanh.pop %v1175
        %v1299 = vtanh.pop %v1178
        %v1300 = vtanh.pop %v1181
        %v1301 = vtanh.pop %v1184
        %v1302 = vtanh.pop %v1187
        %v1303 = vtanh.pop %v1190
        %v1304 = vtanh.pop %v1193
        %v1305 = vtanh.pop %v1196
        %v1306 = vtanh.pop %v1199
        %v1307 = vtanh.pop %v1202
        %v1308 = vtanh.pop %v1205
        %v1309 = vtanh.pop %v1208
        %v1310 = vtanh.pop %v1211
        %v1311 = vtanh.pop %v1214
        %v1312 = vtanh.pop %v1217
        %v1313 = vtanh.pop %v1220
        %v1314 = vtanh.pop %v1223
        %v1315 = vtanh.pop %v1226
        %v1316 = vtanh.pop %v1229
        %v1317 = vtanh.pop %v1232
        %v1318 = vtanh.pop %v1235
        %v1319 = vtanh.pop %v1238
        %v1320 = vtanh.pop %v1241
        %v1321 = vtanh.pop %v1244
        %v1322 = vtanh.pop %v1247
        %v1323 = vtanh.pop %v1250
        %v1324 = vtanh.pop %v1253
        %v1325 = vtanh.pop %v1256
        %v1326 = vtanh.pop %v1259
        %v1327 = vtanh.pop %v1262
        %1328 = vst [vmem:[#allocation2] sm:$0xff] %v1264
        %1329 = vst [vmem:[#allocation2 + $0x8] sm:$0xff] %v1265
        %1330 = vst [vmem:[#allocation2 + $0x10] sm:$0xff] %v1266
        %1331 = vst [vmem:[#allocation2 + $0x18] sm:$0xff] %v1267
        %1332 = vst [vmem:[#allocation2 + $0x20] sm:$0xff] %v1268
        %1333 = vst [vmem:[#allocation2 + $0x28] sm:$0xff] %v1269
        %1334 = vst [vmem:[#allocation2 + $0x30] sm:$0xff] %v1270
        %1335 = vst [vmem:[#allocation2 + $0x38] sm:$0xff] %v1271
        %1336 = vst [vmem:[#allocation2 + $0x40] sm:$0xff] %v1272
        %1337 = vst [vmem:[#allocation2 + $0x48] sm:$0xff] %v1273
        %1338 = vst [vmem:[#allocation2 + $0x50] sm:$0xff] %v1274
        %1339 = vst [vmem:[#allocation2 + $0x58] sm:$0xff] %v1275
        %1340 = vst [vmem:[#allocation2 + $0x60] sm:$0xff] %v1276
        %1341 = vst [vmem:[#allocation2 + $0x68] sm:$0xff] %v1277
        %1342 = vst [vmem:[#allocation2 + $0x70] sm:$0xff] %v1278
        %1343 = vst [vmem:[#allocation2 + $0x78] sm:$0xff] %v1279
        %1344 = vst [vmem:[#allocation2 + $0x80] sm:$0xff] %v1280
        %1345 = vst [vmem:[#allocation2 + $0x88] sm:$0xff] %v1281
        %1346 = vst [vmem:[#allocation2 + $0x90] sm:$0xff] %v1282
        %1347 = vst [vmem:[#allocation2 + $0x98] sm:$0xff] %v1283
        %1348 = vst [vmem:[#allocation2 + $0xa0] sm:$0xff] %v1284
        %1349 = vst [vmem:[#allocation2 + $0xa8] sm:$0xff] %v1285
        %1350 = vst [vmem:[#allocation2 + $0xb0] sm:$0xff] %v1286
        %1351 = vst [vmem:[#allocation2 + $0xb8] sm:$0xff] %v1287
        %1352 = vst [vmem:[#allocation2 + $0xc0] sm:$0xff] %v1288
        %1353 = vst [vmem:[#allocation2 + $0xc8] sm:$0xff] %v1289
        %1354 = vst [vmem:[#allocation2 + $0xd0] sm:$0xff] %v1290
        %1355 = vst [vmem:[#allocation2 + $0xd8] sm:$0xff] %v1291
        %1356 = vst [vmem:[#allocation2 + $0xe0] sm:$0xff] %v1292
        %1357 = vst [vmem:[#allocation2 + $0xe8] sm:$0xff] %v1293
        %1358 = vst [vmem:[#allocation2 + $0xf0] sm:$0xff] %v1294
        %1359 = vst [vmem:[#allocation2 + $0xf8] sm:$0xff] %v1295
        %1360 = vst [vmem:[#allocation2 + $0x100] sm:$0xff] %v1296
        %1361 = vst [vmem:[#allocation2 + $0x108] sm:$0xff] %v1297
        %1362 = vst [vmem:[#allocation2 + $0x110] sm:$0xff] %v1298
        %1363 = vst [vmem:[#allocation2 + $0x118] sm:$0xff] %v1299
        %1364 = vst [vmem:[#allocation2 + $0x120] sm:$0xff] %v1300
        %1365 = vst [vmem:[#allocation2 + $0x128] sm:$0xff] %v1301
        %1366 = vst [vmem:[#allocation2 + $0x130] sm:$0xff] %v1302
        %1367 = vst [vmem:[#allocation2 + $0x138] sm:$0xff] %v1303
        %1368 = vst [vmem:[#allocation2 + $0x140] sm:$0xff] %v1304
        %1369 = vst [vmem:[#allocation2 + $0x148] sm:$0xff] %v1305
        %1370 = vst [vmem:[#allocation2 + $0x150] sm:$0xff] %v1306
        %1371 = vst [vmem:[#allocation2 + $0x158] sm:$0xff] %v1307
        %1372 = vst [vmem:[#allocation2 + $0x160] sm:$0xff] %v1308
        %1373 = vst [vmem:[#allocation2 + $0x168] sm:$0xff] %v1309
        %1374 = vst [vmem:[#allocation2 + $0x170] sm:$0xff] %v1310
        %1375 = vst [vmem:[#allocation2 + $0x178] sm:$0xff] %v1311
        %1376 = vst [vmem:[#allocation2 + $0x180] sm:$0xff] %v1312
        %1377 = vst [vmem:[#allocation2 + $0x188] sm:$0xff] %v1313
        %1378 = vst [vmem:[#allocation2 + $0x190] sm:$0xff] %v1314
        %1379 = vst [vmem:[#allocation2 + $0x198] sm:$0xff] %v1315
        %1380 = vst [vmem:[#allocation2 + $0x1a0] sm:$0xff] %v1316
        %1381 = vst [vmem:[#allocation2 + $0x1a8] sm:$0xff] %v1317
        %1382 = vst [vmem:[#allocation2 + $0x1b0] sm:$0xff] %v1318
        %1383 = vst [vmem:[#allocation2 + $0x1b8] sm:$0xff] %v1319
        %1384 = vst [vmem:[#allocation2 + $0x1c0] sm:$0xff] %v1320
        %1385 = vst [vmem:[#allocation2 + $0x1c8] sm:$0xff] %v1321
        %1386 = vst [vmem:[#allocation2 + $0x1d0] sm:$0xff] %v1322
        %1387 = vst [vmem:[#allocation2 + $0x1d8] sm:$0xff] %v1323
        %1388 = vst [vmem:[#allocation2 + $0x1e0] sm:$0xff] %v1324
        %1389 = vst [vmem:[#allocation2 + $0x1e8] sm:$0xff] %v1325
        %1390 = vst [vmem:[#allocation2 + $0x1f0] sm:$0xff] %v1326
        %1391 = vst [vmem:[#allocation2 + $0x1f8] sm:$0xff] %v1327
        %p1392 = scmp.eq.s32.totalorder %s24, 1
        // Predicated region
        $region53: #{tpu_custom_call.1} parent=47 // pred_check
          %p1393 = pneg %p1392
        $region54: #{tpu_custom_call.1} parent=47 // pred_check_branch
          %1395 = sbr.rel (%p1393) target = $region56
        $region55: #{tpu_custom_call.1} parent=47 // pred_region
          %v1396 = vld [vmem:[#allocation2] sm:$0xff]
          %v1397 = vld [vmem:[#allocation2 + $0x8] sm:$0xff]
          %v1398 = vld [vmem:[#allocation2 + $0x10] sm:$0xff]
          %v1399 = vld [vmem:[#allocation2 + $0x18] sm:$0xff]
          %v1400 = vld [vmem:[#allocation2 + $0x20] sm:$0xff]
          %v1401 = vld [vmem:[#allocation2 + $0x28] sm:$0xff]
          %v1402 = vld [vmem:[#allocation2 + $0x30] sm:$0xff]
          %v1403 = vld [vmem:[#allocation2 + $0x38] sm:$0xff]
          %v1404 = vld [vmem:[#allocation2 + $0x40] sm:$0xff]
          %v1405 = vld [vmem:[#allocation2 + $0x48] sm:$0xff]
          %v1406 = vld [vmem:[#allocation2 + $0x50] sm:$0xff]
          %v1407 = vld [vmem:[#allocation2 + $0x58] sm:$0xff]
          %v1408 = vld [vmem:[#allocation2 + $0x60] sm:$0xff]
          %v1409 = vld [vmem:[#allocation2 + $0x68] sm:$0xff]
          %v1410 = vld [vmem:[#allocation2 + $0x70] sm:$0xff]
          %v1411 = vld [vmem:[#allocation2 + $0x78] sm:$0xff]
          %v1412 = vld [vmem:[#allocation2 + $0x80] sm:$0xff]
          %v1413 = vld [vmem:[#allocation2 + $0x88] sm:$0xff]
          %v1414 = vld [vmem:[#allocation2 + $0x90] sm:$0xff]
          %v1415 = vld [vmem:[#allocation2 + $0x98] sm:$0xff]
          %v1416 = vld [vmem:[#allocation2 + $0xa0] sm:$0xff]
          %v1417 = vld [vmem:[#allocation2 + $0xa8] sm:$0xff]
          %v1418 = vld [vmem:[#allocation2 + $0xb0] sm:$0xff]
          %v1419 = vld [vmem:[#allocation2 + $0xb8] sm:$0xff]
          %v1420 = vld [vmem:[#allocation2 + $0xc0] sm:$0xff]
          %v1421 = vld [vmem:[#allocation2 + $0xc8] sm:$0xff]
          %v1422 = vld [vmem:[#allocation2 + $0xd0] sm:$0xff]
          %v1423 = vld [vmem:[#allocation2 + $0xd8] sm:$0xff]
          %v1424 = vld [vmem:[#allocation2 + $0xe0] sm:$0xff]
          %v1425 = vld [vmem:[#allocation2 + $0xe8] sm:$0xff]
          %v1426 = vld [vmem:[#allocation2 + $0xf0] sm:$0xff]
          %v1427 = vld [vmem:[#allocation2 + $0xf8] sm:$0xff]
          %v1428 = vld [vmem:[#allocation2 + $0x100] sm:$0xff]
          %v1429 = vld [vmem:[#allocation2 + $0x108] sm:$0xff]
          %v1430 = vld [vmem:[#allocation2 + $0x110] sm:$0xff]
          %v1431 = vld [vmem:[#allocation2 + $0x118] sm:$0xff]
          %v1432 = vld [vmem:[#allocation2 + $0x120] sm:$0xff]
          %v1433 = vld [vmem:[#allocation2 + $0x128] sm:$0xff]
          %v1434 = vld [vmem:[#allocation2 + $0x130] sm:$0xff]
          %v1435 = vld [vmem:[#allocation2 + $0x138] sm:$0xff]
          %v1436 = vld [vmem:[#allocation2 + $0x140] sm:$0xff]
          %v1437 = vld [vmem:[#allocation2 + $0x148] sm:$0xff]
          %v1438 = vld [vmem:[#allocation2 + $0x150] sm:$0xff]
          %v1439 = vld [vmem:[#allocation2 + $0x158] sm:$0xff]
          %v1440 = vld [vmem:[#allocation2 + $0x160] sm:$0xff]
          %v1441 = vld [vmem:[#allocation2 + $0x168] sm:$0xff]
          %v1442 = vld [vmem:[#allocation2 + $0x170] sm:$0xff]
          %v1443 = vld [vmem:[#allocation2 + $0x178] sm:$0xff]
          %v1444 = vld [vmem:[#allocation2 + $0x180] sm:$0xff]
          %v1445 = vld [vmem:[#allocation2 + $0x188] sm:$0xff]
          %v1446 = vld [vmem:[#allocation2 + $0x190] sm:$0xff]
          %v1447 = vld [vmem:[#allocation2 + $0x198] sm:$0xff]
          %v1448 = vld [vmem:[#allocation2 + $0x1a0] sm:$0xff]
          %v1449 = vld [vmem:[#allocation2 + $0x1a8] sm:$0xff]
          %v1450 = vld [vmem:[#allocation2 + $0x1b0] sm:$0xff]
          %v1451 = vld [vmem:[#allocation2 + $0x1b8] sm:$0xff]
          %v1452 = vld [vmem:[#allocation2 + $0x1c0] sm:$0xff]
          %v1453 = vld [vmem:[#allocation2 + $0x1c8] sm:$0xff]
          %v1454 = vld [vmem:[#allocation2 + $0x1d0] sm:$0xff]
          %v1455 = vld [vmem:[#allocation2 + $0x1d8] sm:$0xff]
          %v1456 = vld [vmem:[#allocation2 + $0x1e0] sm:$0xff]
          %v1457 = vld [vmem:[#allocation2 + $0x1e8] sm:$0xff]
          %v1458 = vld [vmem:[#allocation2 + $0x1f0] sm:$0xff]
          %v1459 = vld [vmem:[#allocation2 + $0x1f8] sm:$0xff]
          %v1460 = vld [vmem:[%s5] sm:$0xff]
          %v1461 = vld [vmem:[%s5 + $0x8] sm:$0xff]
          %v1462 = vld [vmem:[%s5 + $0x10] sm:$0xff]
          %v1463 = vld [vmem:[%s5 + $0x18] sm:$0xff]
          %v1464 = vld [vmem:[%s5 + $0x20] sm:$0xff]
          %v1465 = vld [vmem:[%s5 + $0x28] sm:$0xff]
          %v1466 = vld [vmem:[%s5 + $0x30] sm:$0xff]
          %v1467 = vld [vmem:[%s5 + $0x38] sm:$0xff]
          %v1468 = vld [vmem:[%s5 + $0x40] sm:$0xff]
          %v1469 = vld [vmem:[%s5 + $0x48] sm:$0xff]
          %v1470 = vld [vmem:[%s5 + $0x50] sm:$0xff]
          %v1471 = vld [vmem:[%s5 + $0x58] sm:$0xff]
          %v1472 = vld [vmem:[%s5 + $0x60] sm:$0xff]
          %v1473 = vld [vmem:[%s5 + $0x68] sm:$0xff]
          %v1474 = vld [vmem:[%s5 + $0x70] sm:$0xff]
          %v1475 = vld [vmem:[%s5 + $0x78] sm:$0xff]
          %v1476 = vld [vmem:[%s6] sm:$0x1]
          %v1478 = vperm.slane %v1476, 0
          %1480 = vmatpush.msra.mxu0 %v1475
          %1481 = vmatpush.msra.mxu0 %v1474
          %1482 = vmatpush.msra.mxu0 %v1473
          %1483 = vmatpush.msra.mxu0 %v1472
          %1484 = vmatpush.msra.mxu0 %v1471
          %1485 = vmatpush.msra.mxu0 %v1470
          %1486 = vmatpush.msra.mxu0 %v1469
          %1487 = vmatpush.msra.mxu0 %v1468
          %1488 = vmatpush.msra.mxu0 %v1467
          %1489 = vmatpush.msra.mxu0 %v1466
          %1490 = vmatpush.msra.mxu0 %v1465
          %1491 = vmatpush.msra.mxu0 %v1464
          %1492 = vmatpush.msra.mxu0 %v1463
          %1493 = vmatpush.msra.mxu0 %v1462
          %1494 = vmatpush.msra.mxu0 %v1461
          %1495 = vmatpush.msra.mxu0 %v1460
          %1496 = vmatmul.f32.gmra.mxu0 %v1396
          %v1497 = vpop.f32.mrf.mxu0
          %v1498 = vadd.f32 %v1478, %v1497
          %1499 = vmatmul.f32.gmra.mxu0 %v1397
          %v1500 = vpop.f32.mrf.mxu0
          %v1501 = vadd.f32 %v1478, %v1500
          %1502 = vmatmul.f32.gmra.mxu0 %v1398
          %v1503 = vpop.f32.mrf.mxu0
          %v1504 = vadd.f32 %v1478, %v1503
          %1505 = vmatmul.f32.gmra.mxu0 %v1399
          %v1506 = vpop.f32.mrf.mxu0
          %v1507 = vadd.f32 %v1478, %v1506
          %1508 = vmatmul.f32.gmra.mxu0 %v1400
          %v1509 = vpop.f32.mrf.mxu0
          %v1510 = vadd.f32 %v1478, %v1509
          %1511 = vmatmul.f32.gmra.mxu0 %v1401
          %v1512 = vpop.f32.mrf.mxu0
          %v1513 = vadd.f32 %v1478, %v1512
          %1514 = vmatmul.f32.gmra.mxu0 %v1402
          %v1515 = vpop.f32.mrf.mxu0
          %v1516 = vadd.f32 %v1478, %v1515
          %1517 = vmatmul.f32.gmra.mxu0 %v1403
          %v1518 = vpop.f32.mrf.mxu0
          %v1519 = vadd.f32 %v1478, %v1518
          %1520 = vmatmul.f32.gmra.mxu0 %v1404
          %v1521 = vpop.f32.mrf.mxu0
          %v1522 = vadd.f32 %v1478, %v1521
          %1523 = vmatmul.f32.gmra.mxu0 %v1405
          %v1524 = vpop.f32.mrf.mxu0
          %v1525 = vadd.f32 %v1478, %v1524
          %1526 = vmatmul.f32.gmra.mxu0 %v1406
          %v1527 = vpop.f32.mrf.mxu0
          %v1528 = vadd.f32 %v1478, %v1527
          %1529 = vmatmul.f32.gmra.mxu0 %v1407
          %v1530 = vpop.f32.mrf.mxu0
          %v1531 = vadd.f32 %v1478, %v1530
          %1532 = vmatmul.f32.gmra.mxu0 %v1408
          %v1533 = vpop.f32.mrf.mxu0
          %v1534 = vadd.f32 %v1478, %v1533
          %1535 = vmatmul.f32.gmra.mxu0 %v1409
          %v1536 = vpop.f32.mrf.mxu0
          %v1537 = vadd.f32 %v1478, %v1536
          %1538 = vmatmul.f32.gmra.mxu0 %v1410
          %v1539 = vpop.f32.mrf.mxu0
          %v1540 = vadd.f32 %v1478, %v1539
          %1541 = vmatmul.f32.gmra.mxu0 %v1411
          %v1542 = vpop.f32.mrf.mxu0
          %v1543 = vadd.f32 %v1478, %v1542
          %1544 = vmatmul.f32.gmra.mxu0 %v1412
          %v1545 = vpop.f32.mrf.mxu0
          %v1546 = vadd.f32 %v1478, %v1545
          %1547 = vmatmul.f32.gmra.mxu0 %v1413
          %v1548 = vpop.f32.mrf.mxu0
          %v1549 = vadd.f32 %v1478, %v1548
          %1550 = vmatmul.f32.gmra.mxu0 %v1414
          %v1551 = vpop.f32.mrf.mxu0
          %v1552 = vadd.f32 %v1478, %v1551
          %1553 = vmatmul.f32.gmra.mxu0 %v1415
          %v1554 = vpop.f32.mrf.mxu0
          %v1555 = vadd.f32 %v1478, %v1554
          %1556 = vmatmul.f32.gmra.mxu0 %v1416
          %v1557 = vpop.f32.mrf.mxu0
          %v1558 = vadd.f32 %v1478, %v1557
          %1559 = vmatmul.f32.gmra.mxu0 %v1417
          %v1560 = vpop.f32.mrf.mxu0
          %v1561 = vadd.f32 %v1478, %v1560
          %1562 = vmatmul.f32.gmra.mxu0 %v1418
          %v1563 = vpop.f32.mrf.mxu0
          %v1564 = vadd.f32 %v1478, %v1563
          %1565 = vmatmul.f32.gmra.mxu0 %v1419
          %v1566 = vpop.f32.mrf.mxu0
          %v1567 = vadd.f32 %v1478, %v1566
          %1568 = vmatmul.f32.gmra.mxu0 %v1420
          %v1569 = vpop.f32.mrf.mxu0
          %v1570 = vadd.f32 %v1478, %v1569
          %1571 = vmatmul.f32.gmra.mxu0 %v1421
          %v1572 = vpop.f32.mrf.mxu0
          %v1573 = vadd.f32 %v1478, %v1572
          %1574 = vmatmul.f32.gmra.mxu0 %v1422
          %v1575 = vpop.f32.mrf.mxu0
          %v1576 = vadd.f32 %v1478, %v1575
          %1577 = vmatmul.f32.gmra.mxu0 %v1423
          %v1578 = vpop.f32.mrf.mxu0
          %v1579 = vadd.f32 %v1478, %v1578
          %1580 = vmatmul.f32.gmra.mxu0 %v1424
          %v1581 = vpop.f32.mrf.mxu0
          %v1582 = vadd.f32 %v1478, %v1581
          %1583 = vmatmul.f32.gmra.mxu0 %v1425
          %v1584 = vpop.f32.mrf.mxu0
          %v1585 = vadd.f32 %v1478, %v1584
          %1586 = vmatmul.f32.gmra.mxu0 %v1426
          %v1587 = vpop.f32.mrf.mxu0
          %v1588 = vadd.f32 %v1478, %v1587
          %1589 = vmatmul.f32.gmra.mxu0 %v1427
          %v1590 = vpop.f32.mrf.mxu0
          %v1591 = vadd.f32 %v1478, %v1590
          %1592 = vmatmul.f32.gmra.mxu0 %v1428
          %v1593 = vpop.f32.mrf.mxu0
          %v1594 = vadd.f32 %v1478, %v1593
          %1595 = vmatmul.f32.gmra.mxu0 %v1429
          %v1596 = vpop.f32.mrf.mxu0
          %v1597 = vadd.f32 %v1478, %v1596
          %1598 = vmatmul.f32.gmra.mxu0 %v1430
          %v1599 = vpop.f32.mrf.mxu0
          %v1600 = vadd.f32 %v1478, %v1599
          %1601 = vmatmul.f32.gmra.mxu0 %v1431
          %v1602 = vpop.f32.mrf.mxu0
          %v1603 = vadd.f32 %v1478, %v1602
          %1604 = vmatmul.f32.gmra.mxu0 %v1432
          %v1605 = vpop.f32.mrf.mxu0
          %v1606 = vadd.f32 %v1478, %v1605
          %1607 = vmatmul.f32.gmra.mxu0 %v1433
          %v1608 = vpop.f32.mrf.mxu0
          %v1609 = vadd.f32 %v1478, %v1608
          %1610 = vmatmul.f32.gmra.mxu0 %v1434
          %v1611 = vpop.f32.mrf.mxu0
          %v1612 = vadd.f32 %v1478, %v1611
          %1613 = vmatmul.f32.gmra.mxu0 %v1435
          %v1614 = vpop.f32.mrf.mxu0
          %v1615 = vadd.f32 %v1478, %v1614
          %1616 = vmatmul.f32.gmra.mxu0 %v1436
          %v1617 = vpop.f32.mrf.mxu0
          %v1618 = vadd.f32 %v1478, %v1617
          %1619 = vmatmul.f32.gmra.mxu0 %v1437
          %v1620 = vpop.f32.mrf.mxu0
          %v1621 = vadd.f32 %v1478, %v1620
          %1622 = vmatmul.f32.gmra.mxu0 %v1438
          %v1623 = vpop.f32.mrf.mxu0
          %v1624 = vadd.f32 %v1478, %v1623
          %1625 = vmatmul.f32.gmra.mxu0 %v1439
          %v1626 = vpop.f32.mrf.mxu0
          %v1627 = vadd.f32 %v1478, %v1626
          %1628 = vmatmul.f32.gmra.mxu0 %v1440
          %v1629 = vpop.f32.mrf.mxu0
          %v1630 = vadd.f32 %v1478, %v1629
          %1631 = vmatmul.f32.gmra.mxu0 %v1441
          %v1632 = vpop.f32.mrf.mxu0
          %v1633 = vadd.f32 %v1478, %v1632
          %1634 = vmatmul.f32.gmra.mxu0 %v1442
          %v1635 = vpop.f32.mrf.mxu0
          %v1636 = vadd.f32 %v1478, %v1635
          %1637 = vmatmul.f32.gmra.mxu0 %v1443
          %v1638 = vpop.f32.mrf.mxu0
          %v1639 = vadd.f32 %v1478, %v1638
          %1640 = vmatmul.f32.gmra.mxu0 %v1444
          %v1641 = vpop.f32.mrf.mxu0
          %v1642 = vadd.f32 %v1478, %v1641
          %1643 = vmatmul.f32.gmra.mxu0 %v1445
          %v1644 = vpop.f32.mrf.mxu0
          %v1645 = vadd.f32 %v1478, %v1644
          %1646 = vmatmul.f32.gmra.mxu0 %v1446
          %v1647 = vpop.f32.mrf.mxu0
          %v1648 = vadd.f32 %v1478, %v1647
          %1649 = vmatmul.f32.gmra.mxu0 %v1447
          %v1650 = vpop.f32.mrf.mxu0
          %v1651 = vadd.f32 %v1478, %v1650
          %1652 = vmatmul.f32.gmra.mxu0 %v1448
          %v1653 = vpop.f32.mrf.mxu0
          %v1654 = vadd.f32 %v1478, %v1653
          %1655 = vmatmul.f32.gmra.mxu0 %v1449
          %v1656 = vpop.f32.mrf.mxu0
          %v1657 = vadd.f32 %v1478, %v1656
          %1658 = vmatmul.f32.gmra.mxu0 %v1450
          %v1659 = vpop.f32.mrf.mxu0
          %v1660 = vadd.f32 %v1478, %v1659
          %1661 = vmatmul.f32.gmra.mxu0 %v1451
          %v1662 = vpop.f32.mrf.mxu0
          %v1663 = vadd.f32 %v1478, %v1662
          %1664 = vmatmul.f32.gmra.mxu0 %v1452
          %v1665 = vpop.f32.mrf.mxu0
          %v1666 = vadd.f32 %v1478, %v1665
          %1667 = vmatmul.f32.gmra.mxu0 %v1453
          %v1668 = vpop.f32.mrf.mxu0
          %v1669 = vadd.f32 %v1478, %v1668
          %1670 = vmatmul.f32.gmra.mxu0 %v1454
          %v1671 = vpop.f32.mrf.mxu0
          %v1672 = vadd.f32 %v1478, %v1671
          %1673 = vmatmul.f32.gmra.mxu0 %v1455
          %v1674 = vpop.f32.mrf.mxu0
          %v1675 = vadd.f32 %v1478, %v1674
          %1676 = vmatmul.f32.gmra.mxu0 %v1456
          %v1677 = vpop.f32.mrf.mxu0
          %v1678 = vadd.f32 %v1478, %v1677
          %1679 = vmatmul.f32.gmra.mxu0 %v1457
          %v1680 = vpop.f32.mrf.mxu0
          %v1681 = vadd.f32 %v1478, %v1680
          %1682 = vmatmul.f32.gmra.mxu0 %v1458
          %v1683 = vpop.f32.mrf.mxu0
          %v1684 = vadd.f32 %v1478, %v1683
          %1685 = vmatmul.f32.gmra.mxu0 %v1459
          %v1686 = vpop.f32.mrf.mxu0
          %v1687 = vadd.f32 %v1478, %v1686
          %1688 = vdwg.mxu0
          %1689 = vst [vmem:[#allocation3] sm:$0xff] %v1498
          %1690 = vst [vmem:[#allocation3 + $0x8] sm:$0xff] %v1501
          %1691 = vst [vmem:[#allocation3 + $0x10] sm:$0xff] %v1504
          %1692 = vst [vmem:[#allocation3 + $0x18] sm:$0xff] %v1507
          %1693 = vst [vmem:[#allocation3 + $0x20] sm:$0xff] %v1510
          %1694 = vst [vmem:[#allocation3 + $0x28] sm:$0xff] %v1513
          %1695 = vst [vmem:[#allocation3 + $0x30] sm:$0xff] %v1516
          %1696 = vst [vmem:[#allocation3 + $0x38] sm:$0xff] %v1519
          %1697 = vst [vmem:[#allocation3 + $0x40] sm:$0xff] %v1522
          %1698 = vst [vmem:[#allocation3 + $0x48] sm:$0xff] %v1525
          %1699 = vst [vmem:[#allocation3 + $0x50] sm:$0xff] %v1528
          %1700 = vst [vmem:[#allocation3 + $0x58] sm:$0xff] %v1531
          %1701 = vst [vmem:[#allocation3 + $0x60] sm:$0xff] %v1534
          %1702 = vst [vmem:[#allocation3 + $0x68] sm:$0xff] %v1537
          %1703 = vst [vmem:[#allocation3 + $0x70] sm:$0xff] %v1540
          %1704 = vst [vmem:[#allocation3 + $0x78] sm:$0xff] %v1543
          %1705 = vst [vmem:[#allocation3 + $0x80] sm:$0xff] %v1546
          %1706 = vst [vmem:[#allocation3 + $0x88] sm:$0xff] %v1549
          %1707 = vst [vmem:[#allocation3 + $0x90] sm:$0xff] %v1552
          %1708 = vst [vmem:[#allocation3 + $0x98] sm:$0xff] %v1555
          %1709 = vst [vmem:[#allocation3 + $0xa0] sm:$0xff] %v1558
          %1710 = vst [vmem:[#allocation3 + $0xa8] sm:$0xff] %v1561
          %1711 = vst [vmem:[#allocation3 + $0xb0] sm:$0xff] %v1564
          %1712 = vst [vmem:[#allocation3 + $0xb8] sm:$0xff] %v1567
          %1713 = vst [vmem:[#allocation3 + $0xc0] sm:$0xff] %v1570
          %1714 = vst [vmem:[#allocation3 + $0xc8] sm:$0xff] %v1573
          %1715 = vst [vmem:[#allocation3 + $0xd0] sm:$0xff] %v1576
          %1716 = vst [vmem:[#allocation3 + $0xd8] sm:$0xff] %v1579
          %1717 = vst [vmem:[#allocation3 + $0xe0] sm:$0xff] %v1582
          %1718 = vst [vmem:[#allocation3 + $0xe8] sm:$0xff] %v1585
          %1719 = vst [vmem:[#allocation3 + $0xf0] sm:$0xff] %v1588
          %1720 = vst [vmem:[#allocation3 + $0xf8] sm:$0xff] %v1591
          %1721 = vst [vmem:[#allocation3 + $0x100] sm:$0xff] %v1594
          %1722 = vst [vmem:[#allocation3 + $0x108] sm:$0xff] %v1597
          %1723 = vst [vmem:[#allocation3 + $0x110] sm:$0xff] %v1600
          %1724 = vst [vmem:[#allocation3 + $0x118] sm:$0xff] %v1603
          %1725 = vst [vmem:[#allocation3 + $0x120] sm:$0xff] %v1606
          %1726 = vst [vmem:[#allocation3 + $0x128] sm:$0xff] %v1609
          %1727 = vst [vmem:[#allocation3 + $0x130] sm:$0xff] %v1612
          %1728 = vst [vmem:[#allocation3 + $0x138] sm:$0xff] %v1615
          %1729 = vst [vmem:[#allocation3 + $0x140] sm:$0xff] %v1618
          %1730 = vst [vmem:[#allocation3 + $0x148] sm:$0xff] %v1621
          %1731 = vst [vmem:[#allocation3 + $0x150] sm:$0xff] %v1624
          %1732 = vst [vmem:[#allocation3 + $0x158] sm:$0xff] %v1627
          %1733 = vst [vmem:[#allocation3 + $0x160] sm:$0xff] %v1630
          %1734 = vst [vmem:[#allocation3 + $0x168] sm:$0xff] %v1633
          %1735 = vst [vmem:[#allocation3 + $0x170] sm:$0xff] %v1636
          %1736 = vst [vmem:[#allocation3 + $0x178] sm:$0xff] %v1639
          %1737 = vst [vmem:[#allocation3 + $0x180] sm:$0xff] %v1642
          %1738 = vst [vmem:[#allocation3 + $0x188] sm:$0xff] %v1645
          %1739 = vst [vmem:[#allocation3 + $0x190] sm:$0xff] %v1648
          %1740 = vst [vmem:[#allocation3 + $0x198] sm:$0xff] %v1651
          %1741 = vst [vmem:[#allocation3 + $0x1a0] sm:$0xff] %v1654
          %1742 = vst [vmem:[#allocation3 + $0x1a8] sm:$0xff] %v1657
          %1743 = vst [vmem:[#allocation3 + $0x1b0] sm:$0xff] %v1660
          %1744 = vst [vmem:[#allocation3 + $0x1b8] sm:$0xff] %v1663
          %1745 = vst [vmem:[#allocation3 + $0x1c0] sm:$0xff] %v1666
          %1746 = vst [vmem:[#allocation3 + $0x1c8] sm:$0xff] %v1669
          %1747 = vst [vmem:[#allocation3 + $0x1d0] sm:$0xff] %v1672
          %1748 = vst [vmem:[#allocation3 + $0x1d8] sm:$0xff] %v1675
          %1749 = vst [vmem:[#allocation3 + $0x1e0] sm:$0xff] %v1678
          %1750 = vst [vmem:[#allocation3 + $0x1e8] sm:$0xff] %v1681
          %1751 = vst [vmem:[#allocation3 + $0x1f0] sm:$0xff] %v1684
          %1752 = vst [vmem:[#allocation3 + $0x1f8] sm:$0xff] %v1687
        $region56: #{tpu_custom_call.1} parent=47 // pred_fallthru
          _
        // Predicated region
        $region57: #{tpu_custom_call.1} parent=47 // pred_check
          %p1753 = pneg %p211
        $region58: #{tpu_custom_call.1} parent=47 // pred_check_branch
          %1755 = sbr.rel (%p1753) target = $region60
        $region59: #{tpu_custom_call.1} parent=47 // pred_region
          %s1756 = smul.u32 64, %s23
          %1758 = vsyncadd [#allocation4], 0
          %s1759 = smul.addr %s1756, 8
          %s1760 = scalar_lea.hbm %s7, %s1759
          %s1761 = sshll.u32 [#allocation3], 4
          %s1762 = int_to_ptr.vmem [resolvable:$true] %s1761
          %s1763 = sshll.u32 %s1760, 4
          %s1764 = int_to_ptr.hbm [resolvable:$true] %s1763
          %1769 = dma.vmem_to_hbm [thread:$0]  %s1762, 8192, %s1764, [#allocation4], 128, 128, 8
        $region60: #{tpu_custom_call.1} parent=47 // pred_fallthru
          _
        // Predicated region
        $region61: #{tpu_custom_call.1} parent=47 // pred_check
          %p1770 = pneg %p211
        $region62: #{tpu_custom_call.1} parent=47 // pred_check_branch
          %1772 = sbr.rel (%p1770) target = $region64
        $region63: #{tpu_custom_call.1} parent=47 // pred_region
          %1774 = dma.done [#allocation4], 8192
        $region64: #{tpu_custom_call.1} parent=47 // pred_fallthru
          _
      $region48: #{tpu_custom_call.1} parent=5 // pred_fallthru
        _
      %p1775 = scmp.le.s32.totalorder 2, %s14
      // Predicated region
      $region65: #{tpu_custom_call.1} parent=5 // pred_check
        %p1776 = pneg %p1775
      $region66: #{tpu_custom_call.1} parent=5 // pred_check_branch
        %1778 = sbr.rel (%p1776) target = $region68
      $region67: #{tpu_custom_call.1} parent=5 // pred_region
        %s1779 = ssub.s32 %s14, 2
      $region68: #{tpu_custom_call.1} parent=5 // pred_fallthru
        _
    $region6: #{tpu_custom_call.1} parent=1 // loop_footer
      %s18 = sadd.s32 1, %s14
    $region7: #{tpu_custom_call.1} parent=1 // loop_footer_branch
      %13 = sbr.rel target = $region3
    $region8: #{tpu_custom_call.1} parent=1 // loop_exit
      _
    %1780 = vsyncpa [#allocation4], 1
    %s1781 = scalar_lea.sflag [#allocation4], 1
    %1782 = vsyncpa %s1781, 1

</llo_original>
